<compile_context>
chip_gen: v5e
topology: v5e:2x2
jax: 0.10.0
libtpu: 0.0.40
codegen_flags: <defaults>
</compile_context>

<pallas_src>
import functools

import jax
import jax.numpy as jnp
from jax.experimental import pallas as pl
from jax.experimental.pallas import tpu as pltpu


# ------------------------------------------------------------------ kernel ---
def lstm_predictor_kernel(
    x2d_ref,     # [T*Bp, I]  time-major, batch-padded input, flattened to 2D
    wih0_ref,    # [I, 4H]    layer-0 input weights (pre-transposed, g-cols x2)
    whh0_ref,    # [H, 4H]    layer-0 hidden weights (pre-transposed, g-cols x2)
    b0_ref,      # [1, 4H]    layer-0 combined bias (g-cols x2)
    w1_ref,      # [2H, 4H]   layer-1 fused [W_ih1; W_hh1] (pre-transposed, g-cols x2)
    b1_ref,      # [1, 4H]    layer-1 combined bias (g-cols x2)
    wfc1_ref,    # [H, H]     head Linear-1 weight (pre-transposed)
    bfc1_ref,    # [1, H]
    wfc2_ref,    # [H, Opad]  head Linear-2 weight, zero-padded to 128 lanes
    bfc2_ref,    # [1, Opad]
    out_ref,     # [Bp, Opad]
    *,
    T: int,
    Bp: int,
    H: int,
):
    # Layer-0 input projection has no recurrent dependency: one big MXU op,
    # bias broadcast-added once (not per unrolled step).
    xproj = (
        jnp.dot(x2d_ref[...], wih0_ref[...], preferred_element_type=jnp.float32)
        + b0_ref[...]
    )                                                    # [T*Bp, 4H]

    whh0 = whh0_ref[...]                                 # [H, 4H]
    w1 = w1_ref[...]                                     # [2H, 4H]
    b1 = jnp.broadcast_to(b1_ref[...], (Bp, 4 * H))      # hoisted broadcast

    def gate_combine(gates, c):
        # g-gate columns were pre-scaled by 2 in the wrapper, so a single
        # full-width sigmoid covers i/f/g/o: tanh(g) = 2*sigmoid(2g) - 1.
        s = jax.nn.sigmoid(gates)                        # [Bp, 4H], one EUP pass
        i = s[:, 0 * H:1 * H]
        f = s[:, 1 * H:2 * H]
        g = 2.0 * s[:, 2 * H:3 * H] - 1.0
        o = s[:, 3 * H:4 * H]
        c_new = f * c + i * g
        h_new = o * jnp.tanh(c_new)
        return h_new, c_new

    h0 = jnp.zeros((Bp, H), jnp.float32)
    c0 = jnp.zeros((Bp, H), jnp.float32)
    h1 = jnp.zeros((Bp, H), jnp.float32)
    c1 = jnp.zeros((Bp, H), jnp.float32)

    # T is small and static -> unrolled time loop; per step the serial chain is
    # exactly one matmul + one full-width sigmoid per layer.
    for t in range(T):
        # layer 0: recurrent matmul only (input projection precomputed above)
        g0 = xproj[t * Bp:(t + 1) * Bp, :] + jnp.dot(
            h0, whh0, preferred_element_type=jnp.float32)
        h0, c0 = gate_combine(g0, c0)
        # layer 1: x- and h-matmuls fused into one via [h0 | h1] concat
        # (inter-layer dropout is identity at inference)
        g1 = jnp.dot(jnp.concatenate([h0, h1], axis=-1), w1,
                     preferred_element_type=jnp.float32) + b1
        h1, c1 = gate_combine(g1, c1)

    # head: Linear -> ReLU -> (Dropout=id) -> Linear on last top-layer hidden.
    z = jnp.dot(h1, wfc1_ref[...], preferred_element_type=jnp.float32) + bfc1_ref[...]
    z = jnp.maximum(z, 0.0)
    out = jnp.dot(z, wfc2_ref[...], preferred_element_type=jnp.float32) + bfc2_ref[...]
    out_ref[...] = out.astype(out_ref.dtype)             # lane-dense, unmasked store


# ----------------------------------------------------------------- wrapper ---
def _round_up(n, m):
    return ((n + m - 1) // m) * m


@jax.jit
def lstm_motion_predictor(x, params):
    """x: [B, T, I] (batch_first, like PyTorch). Returns [B, O] (eval-mode)."""
    B, T, I = x.shape
    H = params["w_hh0"].shape[1]          # PyTorch-shaped [4H, H]
    O = params["w_fc2"].shape[0]

    Bp = _round_up(B, 8)                  # fill sublanes; padded rows sliced off
    Opad = _round_up(O, 128)              # lane-dense output slab

    # Scale the g-gate columns by 2 so tanh(g) = 2*sigmoid(2g) - 1 inside the kernel.
    gscale = jnp.concatenate([
        jnp.ones((H,), jnp.float32), jnp.ones((H,), jnp.float32),
        jnp.full((H,), 2.0, jnp.float32), jnp.ones((H,), jnp.float32)])

    wih0 = params["w_ih0"].T * gscale[None, :]                           # [I, 4H]
    whh0 = params["w_hh0"].T * gscale[None, :]                           # [H, 4H]
    b0 = ((params["b_ih0"] + params["b_hh0"]) * gscale)[None, :]         # [1, 4H]
    w1 = jnp.concatenate([params["w_ih1"].T, params["w_hh1"].T], axis=0) \
        * gscale[None, :]                                                # [2H, 4H]
    b1 = ((params["b_ih1"] + params["b_hh1"]) * gscale)[None, :]         # [1, 4H]
    wfc1 = params["w_fc1"].T                                             # [H, H]
    bfc1 = params["b_fc1"][None, :]                                      # [1, H]
    wfc2 = jnp.zeros((H, Opad), jnp.float32).at[:, :O].set(params["w_fc2"].T)
    bfc2 = jnp.zeros((1, Opad), jnp.float32).at[:, :O].set(params["b_fc2"][None, :])

    # Time-major, batch-padded, flattened-to-2D input for the hoisted projection.
    x_tm = jnp.transpose(x.astype(jnp.float32), (1, 0, 2))               # [T, B, I]
    x_tm = jnp.pad(x_tm, ((0, 0), (0, Bp - B), (0, 0)))                  # [T, Bp, I]
    x2d = x_tm.reshape(T * Bp, I)                                        # [T*Bp, I]

    kernel = functools.partial(lstm_predictor_kernel, T=T, Bp=Bp, H=H)
    operands = (x2d, wih0, whh0, b0, w1, b1, wfc1, bfc1, wfc2, bfc2)

    # Everything fits VMEM hundreds of times over on all generations -> no grid.
    # TODO(synk): for large served batches, add a batch grid with
    # dimension_semantics=("parallel",) to shard across v7x's two TensorCores.
    out_pad = pl.pallas_call(
        kernel,
        out_shape=jax.ShapeDtypeStruct((Bp, Opad), jnp.float32),
        in_specs=[pl.BlockSpec(memory_space=pltpu.MemorySpace.VMEM)] * len(operands),
        out_specs=pl.BlockSpec(memory_space=pltpu.MemorySpace.VMEM),
    )(*operands)

    return out_pad[:B, :O]


# --------------------------------------------------------- param init / ref ---
def init_params(key, input_size, hidden_size, output_size):
    """Deterministic uniform(-1/sqrt(H), 1/sqrt(H)) init, PyTorch-shaped weights."""
    H = hidden_size
    bound = 1.0 / jnp.sqrt(jnp.float32(H))
    shapes = {
        "w_ih0": (4 * H, input_size), "w_hh0": (4 * H, H),
        "b_ih0": (4 * H,), "b_hh0": (4 * H,),
        "w_ih1": (4 * H, H), "w_hh1": (4 * H, H),
        "b_ih1": (4 * H,), "b_hh1": (4 * H,),
        "w_fc1": (H, H), "b_fc1": (H,),
        "w_fc2": (output_size, H), "b_fc2": (output_size,),
    }
    params = {}
    for name, shape in shapes.items():
        key, sub = jax.random.split(key)
        params[name] = jax.random.uniform(
            sub, shape, jnp.float32, minval=-bound, maxval=bound)
    return params


def reference_forward(x, params):
    """Pure-JAX reference mirroring PyTorch nn.LSTM + head (eval mode)."""
    B, T, _ = x.shape
    H = params["w_hh0"].shape[1]

    def cell(x_t, h, c, w_ih, w_hh, b_ih, b_hh):
        gates = x_t @ w_ih.T + h @ w_hh.T + b_ih + b_hh
        i, f, g, o = jnp.split(gates, 4, axis=-1)
        i, f, o = jax.nn.sigmoid(i), jax.nn.sigmoid(f), jax.nn.sigmoid(o)
        g = jnp.tanh(g)
        c = f * c + i * g
        return o * jnp.tanh(c), c

    h0 = c0 = h1 = c1 = jnp.zeros((B, H), jnp.float32)
    for t in range(T):
        h0, c0 = cell(x[:, t, :], h0, c0,
                      params["w_ih0"], params["w_hh0"],
                      params["b_ih0"], params["b_hh0"])
        h1, c1 = cell(h0, h1, c1,
                      params["w_ih1"], params["w_hh1"],
                      params["b_ih1"], params["b_hh1"])
    z = jnp.maximum(h1 @ params["w_fc1"].T + params["b_fc1"], 0.0)
    return z @ params["w_fc2"].T + params["b_fc2"]


# -------------------------------------------------------------------- main ---
if __name__ == "__main__":
    B, T, I, H, O = 2, 8, 16, 32, 8

    key = jax.random.PRNGKey(0)
    key, xk = jax.random.split(key)
    x = jax.random.normal(xk, (B, T, I), jnp.float32)
    params = init_params(key, I, H, O)

    out = lstm_motion_predictor(x, params)
    out = jax.block_until_ready(out)

    ref = jax.block_until_ready(reference_forward(x, params))
    assert out.shape == (B, O)
    assert jnp.allclose(out, ref, rtol=1e-3, atol=1e-3), "mismatch vs JAX reference"

    print("KERNEL_OK")
</pallas_src>

<mosaic_0001>
module attributes {stable_mosaic.version = 11 : i64} {
  func.func @lstm_predictor_kernel(%arg0: memref<64x16xf32, #tpu.memory_space<vmem>>, %arg1: memref<16x128xf32, #tpu.memory_space<vmem>>, %arg2: memref<32x128xf32, #tpu.memory_space<vmem>>, %arg3: memref<1x128xf32, #tpu.memory_space<vmem>>, %arg4: memref<64x128xf32, #tpu.memory_space<vmem>>, %arg5: memref<1x128xf32, #tpu.memory_space<vmem>>, %arg6: memref<32x32xf32, #tpu.memory_space<vmem>>, %arg7: memref<1x32xf32, #tpu.memory_space<vmem>>, %arg8: memref<32x128xf32, #tpu.memory_space<vmem>>, %arg9: memref<1x128xf32, #tpu.memory_space<vmem>>, %arg10: memref<8x128xf32, #tpu.memory_space<vmem>>) attributes {dimension_semantics = [], scalar_prefetch = 0 : i64, scratch_operands = 0 : i64, tpu.core_type = #tpu.core_type<tc>} {
    %c0 = arith.constant 0 : index
    %c0_0 = arith.constant 0 : index
    %0 = vector.load %arg0[%c0, %c0_0] : memref<64x16xf32, #tpu.memory_space<vmem>>, vector<64x16xf32>
    %c0_1 = arith.constant 0 : index
    %c0_2 = arith.constant 0 : index
    %1 = vector.load %arg1[%c0_1, %c0_2] : memref<16x128xf32, #tpu.memory_space<vmem>>, vector<16x128xf32>
    %cst = arith.constant dense<0.000000e+00> : vector<64x128xf32>
    %2 = tpu.matmul %0, %1, %cst {dimension_numbers = #tpu.dot_dimension_numbers<[1], [0], [0], [1], [0, 0, 1, 1], [], []>} : vector<64x16xf32>, vector<16x128xf32>, vector<64x128xf32> -> vector<64x128xf32>
    %c0_3 = arith.constant 0 : index
    %c0_4 = arith.constant 0 : index
    %3 = vector.load %arg3[%c0_3, %c0_4] : memref<1x128xf32, #tpu.memory_space<vmem>>, vector<1x128xf32>
    %4 = vector.broadcast %3 : vector<1x128xf32> to vector<64x128xf32>
    %5 = arith.addf %2, %4 : vector<64x128xf32>
    %c0_5 = arith.constant 0 : index
    %c0_6 = arith.constant 0 : index
    %6 = vector.load %arg2[%c0_5, %c0_6] : memref<32x128xf32, #tpu.memory_space<vmem>>, vector<32x128xf32>
    %c0_7 = arith.constant 0 : index
    %c0_8 = arith.constant 0 : index
    %7 = vector.load %arg4[%c0_7, %c0_8] : memref<64x128xf32, #tpu.memory_space<vmem>>, vector<64x128xf32>
    %c0_9 = arith.constant 0 : index
    %c0_10 = arith.constant 0 : index
    %8 = vector.load %arg5[%c0_9, %c0_10] : memref<1x128xf32, #tpu.memory_space<vmem>>, vector<1x128xf32>
    %9 = vector.shape_cast %8 : vector<1x128xf32> to vector<1x128xf32>
    %10 = vector.broadcast %9 : vector<1x128xf32> to vector<8x128xf32>
    %cst_11 = arith.constant 0.000000e+00 : f32
    %11 = vector.broadcast %cst_11 : f32 to vector<8x32xf32>
    %cst_12 = arith.constant 0.000000e+00 : f32
    %12 = vector.broadcast %cst_12 : f32 to vector<8x32xf32>
    %cst_13 = arith.constant 0.000000e+00 : f32
    %13 = vector.broadcast %cst_13 : f32 to vector<8x32xf32>
    %cst_14 = arith.constant 0.000000e+00 : f32
    %14 = vector.broadcast %cst_14 : f32 to vector<8x32xf32>
    %15 = vector.extract_strided_slice %5 {offsets = [0, 0], sizes = [8, 128], strides = [1, 1]} : vector<64x128xf32> to vector<8x128xf32>
    %cst_15 = arith.constant dense<0.000000e+00> : vector<8x128xf32>
    %16 = tpu.matmul %11, %6, %cst_15 {dimension_numbers = #tpu.dot_dimension_numbers<[1], [0], [0], [1], [0, 0, 1, 1], [], []>} : vector<8x32xf32>, vector<32x128xf32>, vector<8x128xf32> -> vector<8x128xf32>
    %17 = arith.addf %15, %16 : vector<8x128xf32>
    %18 = arith.negf %17 : vector<8x128xf32>
    %19 = math.exp %18 : vector<8x128xf32>
    %cst_16 = arith.constant 1.000000e+00 : f32
    %20 = vector.broadcast %cst_16 : f32 to vector<8x128xf32>
    %21 = arith.addf %20, %19 : vector<8x128xf32>
    %22 = arith.divf %20, %21 : vector<8x128xf32>
    %23 = vector.extract_strided_slice %22 {offsets = [0, 0], sizes = [8, 32], strides = [1, 1]} : vector<8x128xf32> to vector<8x32xf32>
    %24 = vector.extract_strided_slice %22 {offsets = [0, 32], sizes = [8, 32], strides = [1, 1]} : vector<8x128xf32> to vector<8x32xf32>
    %25 = vector.extract_strided_slice %22 {offsets = [0, 64], sizes = [8, 32], strides = [1, 1]} : vector<8x128xf32> to vector<8x32xf32>
    %cst_17 = arith.constant 2.000000e+00 : f32
    %26 = vector.broadcast %cst_17 : f32 to vector<8x32xf32>
    %27 = arith.mulf %26, %25 : vector<8x32xf32>
    %cst_18 = arith.constant 1.000000e+00 : f32
    %28 = vector.broadcast %cst_18 : f32 to vector<8x32xf32>
    %29 = arith.subf %27, %28 : vector<8x32xf32>
    %30 = vector.extract_strided_slice %22 {offsets = [0, 96], sizes = [8, 32], strides = [1, 1]} : vector<8x128xf32> to vector<8x32xf32>
    %31 = arith.mulf %24, %12 : vector<8x32xf32>
    %32 = arith.mulf %23, %29 : vector<8x32xf32>
    %33 = arith.addf %31, %32 : vector<8x32xf32>
    %34 = math.tanh %33 : vector<8x32xf32>
    %35 = arith.mulf %30, %34 : vector<8x32xf32>
    %36 = tpu.concatenate %35, %13 in 1 : vector<8x32xf32>, vector<8x32xf32> -> vector<8x64xf32>
    %cst_19 = arith.constant dense<0.000000e+00> : vector<8x128xf32>
    %37 = tpu.matmul %36, %7, %cst_19 {dimension_numbers = #tpu.dot_dimension_numbers<[1], [0], [0], [1], [0, 0, 1, 1], [], []>} : vector<8x64xf32>, vector<64x128xf32>, vector<8x128xf32> -> vector<8x128xf32>
    %38 = arith.addf %37, %10 : vector<8x128xf32>
    %39 = arith.negf %38 : vector<8x128xf32>
    %40 = math.exp %39 : vector<8x128xf32>
    %cst_20 = arith.constant 1.000000e+00 : f32
    %41 = vector.broadcast %cst_20 : f32 to vector<8x128xf32>
    %42 = arith.addf %41, %40 : vector<8x128xf32>
    %43 = arith.divf %41, %42 : vector<8x128xf32>
    %44 = vector.extract_strided_slice %43 {offsets = [0, 0], sizes = [8, 32], strides = [1, 1]} : vector<8x128xf32> to vector<8x32xf32>
    %45 = vector.extract_strided_slice %43 {offsets = [0, 32], sizes = [8, 32], strides = [1, 1]} : vector<8x128xf32> to vector<8x32xf32>
    %46 = vector.extract_strided_slice %43 {offsets = [0, 64], sizes = [8, 32], strides = [1, 1]} : vector<8x128xf32> to vector<8x32xf32>
    %cst_21 = arith.constant 2.000000e+00 : f32
    %47 = vector.broadcast %cst_21 : f32 to vector<8x32xf32>
    %48 = arith.mulf %47, %46 : vector<8x32xf32>
    %cst_22 = arith.constant 1.000000e+00 : f32
    %49 = vector.broadcast %cst_22 : f32 to vector<8x32xf32>
    %50 = arith.subf %48, %49 : vector<8x32xf32>
    %51 = vector.extract_strided_slice %43 {offsets = [0, 96], sizes = [8, 32], strides = [1, 1]} : vector<8x128xf32> to vector<8x32xf32>
    %52 = arith.mulf %45, %14 : vector<8x32xf32>
    %53 = arith.mulf %44, %50 : vector<8x32xf32>
    %54 = arith.addf %52, %53 : vector<8x32xf32>
    %55 = math.tanh %54 : vector<8x32xf32>
    %56 = arith.mulf %51, %55 : vector<8x32xf32>
    %57 = vector.extract_strided_slice %5 {offsets = [8, 0], sizes = [8, 128], strides = [1, 1]} : vector<64x128xf32> to vector<8x128xf32>
    %cst_23 = arith.constant dense<0.000000e+00> : vector<8x128xf32>
    %58 = tpu.matmul %35, %6, %cst_23 {dimension_numbers = #tpu.dot_dimension_numbers<[1], [0], [0], [1], [0, 0, 1, 1], [], []>} : vector<8x32xf32>, vector<32x128xf32>, vector<8x128xf32> -> vector<8x128xf32>
    %59 = arith.addf %57, %58 : vector<8x128xf32>
    %60 = arith.negf %59 : vector<8x128xf32>
    %61 = math.exp %60 : vector<8x128xf32>
    %cst_24 = arith.constant 1.000000e+00 : f32
    %62 = vector.broadcast %cst_24 : f32 to vector<8x128xf32>
    %63 = arith.addf %62, %61 : vector<8x128xf32>
    %64 = arith.divf %62, %63 : vector<8x128xf32>
    %65 = vector.extract_strided_slice %64 {offsets = [0, 0], sizes = [8, 32], strides = [1, 1]} : vector<8x128xf32> to vector<8x32xf32>
    %66 = vector.extract_strided_slice %64 {offsets = [0, 32], sizes = [8, 32], strides = [1, 1]} : vector<8x128xf32> to vector<8x32xf32>
    %67 = vector.extract_strided_slice %64 {offsets = [0, 64], sizes = [8, 32], strides = [1, 1]} : vector<8x128xf32> to vector<8x32xf32>
    %cst_25 = arith.constant 2.000000e+00 : f32
    %68 = vector.broadcast %cst_25 : f32 to vector<8x32xf32>
    %69 = arith.mulf %68, %67 : vector<8x32xf32>
    %cst_26 = arith.constant 1.000000e+00 : f32
    %70 = vector.broadcast %cst_26 : f32 to vector<8x32xf32>
    %71 = arith.subf %69, %70 : vector<8x32xf32>
    %72 = vector.extract_strided_slice %64 {offsets = [0, 96], sizes = [8, 32], strides = [1, 1]} : vector<8x128xf32> to vector<8x32xf32>
    %73 = arith.mulf %66, %33 : vector<8x32xf32>
    %74 = arith.mulf %65, %71 : vector<8x32xf32>
    %75 = arith.addf %73, %74 : vector<8x32xf32>
    %76 = math.tanh %75 : vector<8x32xf32>
    %77 = arith.mulf %72, %76 : vector<8x32xf32>
    %78 = tpu.concatenate %77, %56 in 1 : vector<8x32xf32>, vector<8x32xf32> -> vector<8x64xf32>
    %cst_27 = arith.constant dense<0.000000e+00> : vector<8x128xf32>
    %79 = tpu.matmul %78, %7, %cst_27 {dimension_numbers = #tpu.dot_dimension_numbers<[1], [0], [0], [1], [0, 0, 1, 1], [], []>} : vector<8x64xf32>, vector<64x128xf32>, vector<8x128xf32> -> vector<8x128xf32>
    %80 = arith.addf %79, %10 : vector<8x128xf32>
    %81 = arith.negf %80 : vector<8x128xf32>
    %82 = math.exp %81 : vector<8x128xf32>
    %cst_28 = arith.constant 1.000000e+00 : f32
    %83 = vector.broadcast %cst_28 : f32 to vector<8x128xf32>
    %84 = arith.addf %83, %82 : vector<8x128xf32>
    %85 = arith.divf %83, %84 : vector<8x128xf32>
    %86 = vector.extract_strided_slice %85 {offsets = [0, 0], sizes = [8, 32], strides = [1, 1]} : vector<8x128xf32> to vector<8x32xf32>
    %87 = vector.extract_strided_slice %85 {offsets = [0, 32], sizes = [8, 32], strides = [1, 1]} : vector<8x128xf32> to vector<8x32xf32>
    %88 = vector.extract_strided_slice %85 {offsets = [0, 64], sizes = [8, 32], strides = [1, 1]} : vector<8x128xf32> to vector<8x32xf32>
    %cst_29 = arith.constant 2.000000e+00 : f32
    %89 = vector.broadcast %cst_29 : f32 to vector<8x32xf32>
    %90 = arith.mulf %89, %88 : vector<8x32xf32>
    %cst_30 = arith.constant 1.000000e+00 : f32
    %91 = vector.broadcast %cst_30 : f32 to vector<8x32xf32>
    %92 = arith.subf %90, %91 : vector<8x32xf32>
    %93 = vector.extract_strided_slice %85 {offsets = [0, 96], sizes = [8, 32], strides = [1, 1]} : vector<8x128xf32> to vector<8x32xf32>
    %94 = arith.mulf %87, %54 : vector<8x32xf32>
    %95 = arith.mulf %86, %92 : vector<8x32xf32>
    %96 = arith.addf %94, %95 : vector<8x32xf32>
    %97 = math.tanh %96 : vector<8x32xf32>
    %98 = arith.mulf %93, %97 : vector<8x32xf32>
    %99 = vector.extract_strided_slice %5 {offsets = [16, 0], sizes = [8, 128], strides = [1, 1]} : vector<64x128xf32> to vector<8x128xf32>
    %cst_31 = arith.constant dense<0.000000e+00> : vector<8x128xf32>
    %100 = tpu.matmul %77, %6, %cst_31 {dimension_numbers = #tpu.dot_dimension_numbers<[1], [0], [0], [1], [0, 0, 1, 1], [], []>} : vector<8x32xf32>, vector<32x128xf32>, vector<8x128xf32> -> vector<8x128xf32>
    %101 = arith.addf %99, %100 : vector<8x128xf32>
    %102 = arith.negf %101 : vector<8x128xf32>
    %103 = math.exp %102 : vector<8x128xf32>
    %cst_32 = arith.constant 1.000000e+00 : f32
    %104 = vector.broadcast %cst_32 : f32 to vector<8x128xf32>
    %105 = arith.addf %104, %103 : vector<8x128xf32>
    %106 = arith.divf %104, %105 : vector<8x128xf32>
    %107 = vector.extract_strided_slice %106 {offsets = [0, 0], sizes = [8, 32], strides = [1, 1]} : vector<8x128xf32> to vector<8x32xf32>
    %108 = vector.extract_strided_slice %106 {offsets = [0, 32], sizes = [8, 32], strides = [1, 1]} : vector<8x128xf32> to vector<8x32xf32>
    %109 = vector.extract_strided_slice %106 {offsets = [0, 64], sizes = [8, 32], strides = [1, 1]} : vector<8x128xf32> to vector<8x32xf32>
    %cst_33 = arith.constant 2.000000e+00 : f32
    %110 = vector.broadcast %cst_33 : f32 to vector<8x32xf32>
    %111 = arith.mulf %110, %109 : vector<8x32xf32>
    %cst_34 = arith.constant 1.000000e+00 : f32
    %112 = vector.broadcast %cst_34 : f32 to vector<8x32xf32>
    %113 = arith.subf %111, %112 : vector<8x32xf32>
    %114 = vector.extract_strided_slice %106 {offsets = [0, 96], sizes = [8, 32], strides = [1, 1]} : vector<8x128xf32> to vector<8x32xf32>
    %115 = arith.mulf %108, %75 : vector<8x32xf32>
    %116 = arith.mulf %107, %113 : vector<8x32xf32>
    %117 = arith.addf %115, %116 : vector<8x32xf32>
    %118 = math.tanh %117 : vector<8x32xf32>
    %119 = arith.mulf %114, %118 : vector<8x32xf32>
    %120 = tpu.concatenate %119, %98 in 1 : vector<8x32xf32>, vector<8x32xf32> -> vector<8x64xf32>
    %cst_35 = arith.constant dense<0.000000e+00> : vector<8x128xf32>
    %121 = tpu.matmul %120, %7, %cst_35 {dimension_numbers = #tpu.dot_dimension_numbers<[1], [0], [0], [1], [0, 0, 1, 1], [], []>} : vector<8x64xf32>, vector<64x128xf32>, vector<8x128xf32> -> vector<8x128xf32>
    %122 = arith.addf %121, %10 : vector<8x128xf32>
    %123 = arith.negf %122 : vector<8x128xf32>
    %124 = math.exp %123 : vector<8x128xf32>
    %cst_36 = arith.constant 1.000000e+00 : f32
    %125 = vector.broadcast %cst_36 : f32 to vector<8x128xf32>
    %126 = arith.addf %125, %124 : vector<8x128xf32>
    %127 = arith.divf %125, %126 : vector<8x128xf32>
    %128 = vector.extract_strided_slice %127 {offsets = [0, 0], sizes = [8, 32], strides = [1, 1]} : vector<8x128xf32> to vector<8x32xf32>
    %129 = vector.extract_strided_slice %127 {offsets = [0, 32], sizes = [8, 32], strides = [1, 1]} : vector<8x128xf32> to vector<8x32xf32>
    %130 = vector.extract_strided_slice %127 {offsets = [0, 64], sizes = [8, 32], strides = [1, 1]} : vector<8x128xf32> to vector<8x32xf32>
    %cst_37 = arith.constant 2.000000e+00 : f32
    %131 = vector.broadcast %cst_37 : f32 to vector<8x32xf32>
    %132 = arith.mulf %131, %130 : vector<8x32xf32>
    %cst_38 = arith.constant 1.000000e+00 : f32
    %133 = vector.broadcast %cst_38 : f32 to vector<8x32xf32>
    %134 = arith.subf %132, %133 : vector<8x32xf32>
    %135 = vector.extract_strided_slice %127 {offsets = [0, 96], sizes = [8, 32], strides = [1, 1]} : vector<8x128xf32> to vector<8x32xf32>
    %136 = arith.mulf %129, %96 : vector<8x32xf32>
    %137 = arith.mulf %128, %134 : vector<8x32xf32>
    %138 = arith.addf %136, %137 : vector<8x32xf32>
    %139 = math.tanh %138 : vector<8x32xf32>
    %140 = arith.mulf %135, %139 : vector<8x32xf32>
    %141 = vector.extract_strided_slice %5 {offsets = [24, 0], sizes = [8, 128], strides = [1, 1]} : vector<64x128xf32> to vector<8x128xf32>
    %cst_39 = arith.constant dense<0.000000e+00> : vector<8x128xf32>
    %142 = tpu.matmul %119, %6, %cst_39 {dimension_numbers = #tpu.dot_dimension_numbers<[1], [0], [0], [1], [0, 0, 1, 1], [], []>} : vector<8x32xf32>, vector<32x128xf32>, vector<8x128xf32> -> vector<8x128xf32>
    %143 = arith.addf %141, %142 : vector<8x128xf32>
    %144 = arith.negf %143 : vector<8x128xf32>
    %145 = math.exp %144 : vector<8x128xf32>
    %cst_40 = arith.constant 1.000000e+00 : f32
    %146 = vector.broadcast %cst_40 : f32 to vector<8x128xf32>
    %147 = arith.addf %146, %145 : vector<8x128xf32>
    %148 = arith.divf %146, %147 : vector<8x128xf32>
    %149 = vector.extract_strided_slice %148 {offsets = [0, 0], sizes = [8, 32], strides = [1, 1]} : vector<8x128xf32> to vector<8x32xf32>
    %150 = vector.extract_strided_slice %148 {offsets = [0, 32], sizes = [8, 32], strides = [1, 1]} : vector<8x128xf32> to vector<8x32xf32>
    %151 = vector.extract_strided_slice %148 {offsets = [0, 64], sizes = [8, 32], strides = [1, 1]} : vector<8x128xf32> to vector<8x32xf32>
    %cst_41 = arith.constant 2.000000e+00 : f32
    %152 = vector.broadcast %cst_41 : f32 to vector<8x32xf32>
    %153 = arith.mulf %152, %151 : vector<8x32xf32>
    %cst_42 = arith.constant 1.000000e+00 : f32
    %154 = vector.broadcast %cst_42 : f32 to vector<8x32xf32>
    %155 = arith.subf %153, %154 : vector<8x32xf32>
    %156 = vector.extract_strided_slice %148 {offsets = [0, 96], sizes = [8, 32], strides = [1, 1]} : vector<8x128xf32> to vector<8x32xf32>
    %157 = arith.mulf %150, %117 : vector<8x32xf32>
    %158 = arith.mulf %149, %155 : vector<8x32xf32>
    %159 = arith.addf %157, %158 : vector<8x32xf32>
    %160 = math.tanh %159 : vector<8x32xf32>
    %161 = arith.mulf %156, %160 : vector<8x32xf32>
    %162 = tpu.concatenate %161, %140 in 1 : vector<8x32xf32>, vector<8x32xf32> -> vector<8x64xf32>
    %cst_43 = arith.constant dense<0.000000e+00> : vector<8x128xf32>
    %163 = tpu.matmul %162, %7, %cst_43 {dimension_numbers = #tpu.dot_dimension_numbers<[1], [0], [0], [1], [0, 0, 1, 1], [], []>} : vector<8x64xf32>, vector<64x128xf32>, vector<8x128xf32> -> vector<8x128xf32>
    %164 = arith.addf %163, %10 : vector<8x128xf32>
    %165 = arith.negf %164 : vector<8x128xf32>
    %166 = math.exp %165 : vector<8x128xf32>
    %cst_44 = arith.constant 1.000000e+00 : f32
    %167 = vector.broadcast %cst_44 : f32 to vector<8x128xf32>
    %168 = arith.addf %167, %166 : vector<8x128xf32>
    %169 = arith.divf %167, %168 : vector<8x128xf32>
    %170 = vector.extract_strided_slice %169 {offsets = [0, 0], sizes = [8, 32], strides = [1, 1]} : vector<8x128xf32> to vector<8x32xf32>
    %171 = vector.extract_strided_slice %169 {offsets = [0, 32], sizes = [8, 32], strides = [1, 1]} : vector<8x128xf32> to vector<8x32xf32>
    %172 = vector.extract_strided_slice %169 {offsets = [0, 64], sizes = [8, 32], strides = [1, 1]} : vector<8x128xf32> to vector<8x32xf32>
    %cst_45 = arith.constant 2.000000e+00 : f32
    %173 = vector.broadcast %cst_45 : f32 to vector<8x32xf32>
    %174 = arith.mulf %173, %172 : vector<8x32xf32>
    %cst_46 = arith.constant 1.000000e+00 : f32
    %175 = vector.broadcast %cst_46 : f32 to vector<8x32xf32>
    %176 = arith.subf %174, %175 : vector<8x32xf32>
    %177 = vector.extract_strided_slice %169 {offsets = [0, 96], sizes = [8, 32], strides = [1, 1]} : vector<8x128xf32> to vector<8x32xf32>
    %178 = arith.mulf %171, %138 : vector<8x32xf32>
    %179 = arith.mulf %170, %176 : vector<8x32xf32>
    %180 = arith.addf %178, %179 : vector<8x32xf32>
    %181 = math.tanh %180 : vector<8x32xf32>
    %182 = arith.mulf %177, %181 : vector<8x32xf32>
    %183 = vector.extract_strided_slice %5 {offsets = [32, 0], sizes = [8, 128], strides = [1, 1]} : vector<64x128xf32> to vector<8x128xf32>
    %cst_47 = arith.constant dense<0.000000e+00> : vector<8x128xf32>
    %184 = tpu.matmul %161, %6, %cst_47 {dimension_numbers = #tpu.dot_dimension_numbers<[1], [0], [0], [1], [0, 0, 1, 1], [], []>} : vector<8x32xf32>, vector<32x128xf32>, vector<8x128xf32> -> vector<8x128xf32>
    %185 = arith.addf %183, %184 : vector<8x128xf32>
    %186 = arith.negf %185 : vector<8x128xf32>
    %187 = math.exp %186 : vector<8x128xf32>
    %cst_48 = arith.constant 1.000000e+00 : f32
    %188 = vector.broadcast %cst_48 : f32 to vector<8x128xf32>
    %189 = arith.addf %188, %187 : vector<8x128xf32>
    %190 = arith.divf %188, %189 : vector<8x128xf32>
    %191 = vector.extract_strided_slice %190 {offsets = [0, 0], sizes = [8, 32], strides = [1, 1]} : vector<8x128xf32> to vector<8x32xf32>
    %192 = vector.extract_strided_slice %190 {offsets = [0, 32], sizes = [8, 32], strides = [1, 1]} : vector<8x128xf32> to vector<8x32xf32>
    %193 = vector.extract_strided_slice %190 {offsets = [0, 64], sizes = [8, 32], strides = [1, 1]} : vector<8x128xf32> to vector<8x32xf32>
    %cst_49 = arith.constant 2.000000e+00 : f32
    %194 = vector.broadcast %cst_49 : f32 to vector<8x32xf32>
    %195 = arith.mulf %194, %193 : vector<8x32xf32>
    %cst_50 = arith.constant 1.000000e+00 : f32
    %196 = vector.broadcast %cst_50 : f32 to vector<8x32xf32>
    %197 = arith.subf %195, %196 : vector<8x32xf32>
    %198 = vector.extract_strided_slice %190 {offsets = [0, 96], sizes = [8, 32], strides = [1, 1]} : vector<8x128xf32> to vector<8x32xf32>
    %199 = arith.mulf %192, %159 : vector<8x32xf32>
    %200 = arith.mulf %191, %197 : vector<8x32xf32>
    %201 = arith.addf %199, %200 : vector<8x32xf32>
    %202 = math.tanh %201 : vector<8x32xf32>
    %203 = arith.mulf %198, %202 : vector<8x32xf32>
    %204 = tpu.concatenate %203, %182 in 1 : vector<8x32xf32>, vector<8x32xf32> -> vector<8x64xf32>
    %cst_51 = arith.constant dense<0.000000e+00> : vector<8x128xf32>
    %205 = tpu.matmul %204, %7, %cst_51 {dimension_numbers = #tpu.dot_dimension_numbers<[1], [0], [0], [1], [0, 0, 1, 1], [], []>} : vector<8x64xf32>, vector<64x128xf32>, vector<8x128xf32> -> vector<8x128xf32>
    %206 = arith.addf %205, %10 : vector<8x128xf32>
    %207 = arith.negf %206 : vector<8x128xf32>
    %208 = math.exp %207 : vector<8x128xf32>
    %cst_52 = arith.constant 1.000000e+00 : f32
    %209 = vector.broadcast %cst_52 : f32 to vector<8x128xf32>
    %210 = arith.addf %209, %208 : vector<8x128xf32>
    %211 = arith.divf %209, %210 : vector<8x128xf32>
    %212 = vector.extract_strided_slice %211 {offsets = [0, 0], sizes = [8, 32], strides = [1, 1]} : vector<8x128xf32> to vector<8x32xf32>
    %213 = vector.extract_strided_slice %211 {offsets = [0, 32], sizes = [8, 32], strides = [1, 1]} : vector<8x128xf32> to vector<8x32xf32>
    %214 = vector.extract_strided_slice %211 {offsets = [0, 64], sizes = [8, 32], strides = [1, 1]} : vector<8x128xf32> to vector<8x32xf32>
    %cst_53 = arith.constant 2.000000e+00 : f32
    %215 = vector.broadcast %cst_53 : f32 to vector<8x32xf32>
    %216 = arith.mulf %215, %214 : vector<8x32xf32>
    %cst_54 = arith.constant 1.000000e+00 : f32
    %217 = vector.broadcast %cst_54 : f32 to vector<8x32xf32>
    %218 = arith.subf %216, %217 : vector<8x32xf32>
    %219 = vector.extract_strided_slice %211 {offsets = [0, 96], sizes = [8, 32], strides = [1, 1]} : vector<8x128xf32> to vector<8x32xf32>
    %220 = arith.mulf %213, %180 : vector<8x32xf32>
    %221 = arith.mulf %212, %218 : vector<8x32xf32>
    %222 = arith.addf %220, %221 : vector<8x32xf32>
    %223 = math.tanh %222 : vector<8x32xf32>
    %224 = arith.mulf %219, %223 : vector<8x32xf32>
    %225 = vector.extract_strided_slice %5 {offsets = [40, 0], sizes = [8, 128], strides = [1, 1]} : vector<64x128xf32> to vector<8x128xf32>
    %cst_55 = arith.constant dense<0.000000e+00> : vector<8x128xf32>
    %226 = tpu.matmul %203, %6, %cst_55 {dimension_numbers = #tpu.dot_dimension_numbers<[1], [0], [0], [1], [0, 0, 1, 1], [], []>} : vector<8x32xf32>, vector<32x128xf32>, vector<8x128xf32> -> vector<8x128xf32>
    %227 = arith.addf %225, %226 : vector<8x128xf32>
    %228 = arith.negf %227 : vector<8x128xf32>
    %229 = math.exp %228 : vector<8x128xf32>
    %cst_56 = arith.constant 1.000000e+00 : f32
    %230 = vector.broadcast %cst_56 : f32 to vector<8x128xf32>
    %231 = arith.addf %230, %229 : vector<8x128xf32>
    %232 = arith.divf %230, %231 : vector<8x128xf32>
    %233 = vector.extract_strided_slice %232 {offsets = [0, 0], sizes = [8, 32], strides = [1, 1]} : vector<8x128xf32> to vector<8x32xf32>
    %234 = vector.extract_strided_slice %232 {offsets = [0, 32], sizes = [8, 32], strides = [1, 1]} : vector<8x128xf32> to vector<8x32xf32>
    %235 = vector.extract_strided_slice %232 {offsets = [0, 64], sizes = [8, 32], strides = [1, 1]} : vector<8x128xf32> to vector<8x32xf32>
    %cst_57 = arith.constant 2.000000e+00 : f32
    %236 = vector.broadcast %cst_57 : f32 to vector<8x32xf32>
    %237 = arith.mulf %236, %235 : vector<8x32xf32>
    %cst_58 = arith.constant 1.000000e+00 : f32
    %238 = vector.broadcast %cst_58 : f32 to vector<8x32xf32>
    %239 = arith.subf %237, %238 : vector<8x32xf32>
    %240 = vector.extract_strided_slice %232 {offsets = [0, 96], sizes = [8, 32], strides = [1, 1]} : vector<8x128xf32> to vector<8x32xf32>
    %241 = arith.mulf %234, %201 : vector<8x32xf32>
    %242 = arith.mulf %233, %239 : vector<8x32xf32>
    %243 = arith.addf %241, %242 : vector<8x32xf32>
    %244 = math.tanh %243 : vector<8x32xf32>
    %245 = arith.mulf %240, %244 : vector<8x32xf32>
    %246 = tpu.concatenate %245, %224 in 1 : vector<8x32xf32>, vector<8x32xf32> -> vector<8x64xf32>
    %cst_59 = arith.constant dense<0.000000e+00> : vector<8x128xf32>
    %247 = tpu.matmul %246, %7, %cst_59 {dimension_numbers = #tpu.dot_dimension_numbers<[1], [0], [0], [1], [0, 0, 1, 1], [], []>} : vector<8x64xf32>, vector<64x128xf32>, vector<8x128xf32> -> vector<8x128xf32>
    %248 = arith.addf %247, %10 : vector<8x128xf32>
    %249 = arith.negf %248 : vector<8x128xf32>
    %250 = math.exp %249 : vector<8x128xf32>
    %cst_60 = arith.constant 1.000000e+00 : f32
    %251 = vector.broadcast %cst_60 : f32 to vector<8x128xf32>
    %252 = arith.addf %251, %250 : vector<8x128xf32>
    %253 = arith.divf %251, %252 : vector<8x128xf32>
    %254 = vector.extract_strided_slice %253 {offsets = [0, 0], sizes = [8, 32], strides = [1, 1]} : vector<8x128xf32> to vector<8x32xf32>
    %255 = vector.extract_strided_slice %253 {offsets = [0, 32], sizes = [8, 32], strides = [1, 1]} : vector<8x128xf32> to vector<8x32xf32>
    %256 = vector.extract_strided_slice %253 {offsets = [0, 64], sizes = [8, 32], strides = [1, 1]} : vector<8x128xf32> to vector<8x32xf32>
    %cst_61 = arith.constant 2.000000e+00 : f32
    %257 = vector.broadcast %cst_61 : f32 to vector<8x32xf32>
    %258 = arith.mulf %257, %256 : vector<8x32xf32>
    %cst_62 = arith.constant 1.000000e+00 : f32
    %259 = vector.broadcast %cst_62 : f32 to vector<8x32xf32>
    %260 = arith.subf %258, %259 : vector<8x32xf32>
    %261 = vector.extract_strided_slice %253 {offsets = [0, 96], sizes = [8, 32], strides = [1, 1]} : vector<8x128xf32> to vector<8x32xf32>
    %262 = arith.mulf %255, %222 : vector<8x32xf32>
    %263 = arith.mulf %254, %260 : vector<8x32xf32>
    %264 = arith.addf %262, %263 : vector<8x32xf32>
    %265 = math.tanh %264 : vector<8x32xf32>
    %266 = arith.mulf %261, %265 : vector<8x32xf32>
    %267 = vector.extract_strided_slice %5 {offsets = [48, 0], sizes = [8, 128], strides = [1, 1]} : vector<64x128xf32> to vector<8x128xf32>
    %cst_63 = arith.constant dense<0.000000e+00> : vector<8x128xf32>
    %268 = tpu.matmul %245, %6, %cst_63 {dimension_numbers = #tpu.dot_dimension_numbers<[1], [0], [0], [1], [0, 0, 1, 1], [], []>} : vector<8x32xf32>, vector<32x128xf32>, vector<8x128xf32> -> vector<8x128xf32>
    %269 = arith.addf %267, %268 : vector<8x128xf32>
    %270 = arith.negf %269 : vector<8x128xf32>
    %271 = math.exp %270 : vector<8x128xf32>
    %cst_64 = arith.constant 1.000000e+00 : f32
    %272 = vector.broadcast %cst_64 : f32 to vector<8x128xf32>
    %273 = arith.addf %272, %271 : vector<8x128xf32>
    %274 = arith.divf %272, %273 : vector<8x128xf32>
    %275 = vector.extract_strided_slice %274 {offsets = [0, 0], sizes = [8, 32], strides = [1, 1]} : vector<8x128xf32> to vector<8x32xf32>
    %276 = vector.extract_strided_slice %274 {offsets = [0, 32], sizes = [8, 32], strides = [1, 1]} : vector<8x128xf32> to vector<8x32xf32>
    %277 = vector.extract_strided_slice %274 {offsets = [0, 64], sizes = [8, 32], strides = [1, 1]} : vector<8x128xf32> to vector<8x32xf32>
    %cst_65 = arith.constant 2.000000e+00 : f32
    %278 = vector.broadcast %cst_65 : f32 to vector<8x32xf32>
    %279 = arith.mulf %278, %277 : vector<8x32xf32>
    %cst_66 = arith.constant 1.000000e+00 : f32
    %280 = vector.broadcast %cst_66 : f32 to vector<8x32xf32>
    %281 = arith.subf %279, %280 : vector<8x32xf32>
    %282 = vector.extract_strided_slice %274 {offsets = [0, 96], sizes = [8, 32], strides = [1, 1]} : vector<8x128xf32> to vector<8x32xf32>
    %283 = arith.mulf %276, %243 : vector<8x32xf32>
    %284 = arith.mulf %275, %281 : vector<8x32xf32>
    %285 = arith.addf %283, %284 : vector<8x32xf32>
    %286 = math.tanh %285 : vector<8x32xf32>
    %287 = arith.mulf %282, %286 : vector<8x32xf32>
    %288 = tpu.concatenate %287, %266 in 1 : vector<8x32xf32>, vector<8x32xf32> -> vector<8x64xf32>
    %cst_67 = arith.constant dense<0.000000e+00> : vector<8x128xf32>
    %289 = tpu.matmul %288, %7, %cst_67 {dimension_numbers = #tpu.dot_dimension_numbers<[1], [0], [0], [1], [0, 0, 1, 1], [], []>} : vector<8x64xf32>, vector<64x128xf32>, vector<8x128xf32> -> vector<8x128xf32>
    %290 = arith.addf %289, %10 : vector<8x128xf32>
    %291 = arith.negf %290 : vector<8x128xf32>
    %292 = math.exp %291 : vector<8x128xf32>
    %cst_68 = arith.constant 1.000000e+00 : f32
    %293 = vector.broadcast %cst_68 : f32 to vector<8x128xf32>
    %294 = arith.addf %293, %292 : vector<8x128xf32>
    %295 = arith.divf %293, %294 : vector<8x128xf32>
    %296 = vector.extract_strided_slice %295 {offsets = [0, 0], sizes = [8, 32], strides = [1, 1]} : vector<8x128xf32> to vector<8x32xf32>
    %297 = vector.extract_strided_slice %295 {offsets = [0, 32], sizes = [8, 32], strides = [1, 1]} : vector<8x128xf32> to vector<8x32xf32>
    %298 = vector.extract_strided_slice %295 {offsets = [0, 64], sizes = [8, 32], strides = [1, 1]} : vector<8x128xf32> to vector<8x32xf32>
    %cst_69 = arith.constant 2.000000e+00 : f32
    %299 = vector.broadcast %cst_69 : f32 to vector<8x32xf32>
    %300 = arith.mulf %299, %298 : vector<8x32xf32>
    %cst_70 = arith.constant 1.000000e+00 : f32
    %301 = vector.broadcast %cst_70 : f32 to vector<8x32xf32>
    %302 = arith.subf %300, %301 : vector<8x32xf32>
    %303 = vector.extract_strided_slice %295 {offsets = [0, 96], sizes = [8, 32], strides = [1, 1]} : vector<8x128xf32> to vector<8x32xf32>
    %304 = arith.mulf %297, %264 : vector<8x32xf32>
    %305 = arith.mulf %296, %302 : vector<8x32xf32>
    %306 = arith.addf %304, %305 : vector<8x32xf32>
    %307 = math.tanh %306 : vector<8x32xf32>
    %308 = arith.mulf %303, %307 : vector<8x32xf32>
    %309 = vector.extract_strided_slice %5 {offsets = [56, 0], sizes = [8, 128], strides = [1, 1]} : vector<64x128xf32> to vector<8x128xf32>
    %cst_71 = arith.constant dense<0.000000e+00> : vector<8x128xf32>
    %310 = tpu.matmul %287, %6, %cst_71 {dimension_numbers = #tpu.dot_dimension_numbers<[1], [0], [0], [1], [0, 0, 1, 1], [], []>} : vector<8x32xf32>, vector<32x128xf32>, vector<8x128xf32> -> vector<8x128xf32>
    %311 = arith.addf %309, %310 : vector<8x128xf32>
    %312 = arith.negf %311 : vector<8x128xf32>
    %313 = math.exp %312 : vector<8x128xf32>
    %cst_72 = arith.constant 1.000000e+00 : f32
    %314 = vector.broadcast %cst_72 : f32 to vector<8x128xf32>
    %315 = arith.addf %314, %313 : vector<8x128xf32>
    %316 = arith.divf %314, %315 : vector<8x128xf32>
    %317 = vector.extract_strided_slice %316 {offsets = [0, 0], sizes = [8, 32], strides = [1, 1]} : vector<8x128xf32> to vector<8x32xf32>
    %318 = vector.extract_strided_slice %316 {offsets = [0, 32], sizes = [8, 32], strides = [1, 1]} : vector<8x128xf32> to vector<8x32xf32>
    %319 = vector.extract_strided_slice %316 {offsets = [0, 64], sizes = [8, 32], strides = [1, 1]} : vector<8x128xf32> to vector<8x32xf32>
    %cst_73 = arith.constant 2.000000e+00 : f32
    %320 = vector.broadcast %cst_73 : f32 to vector<8x32xf32>
    %321 = arith.mulf %320, %319 : vector<8x32xf32>
    %cst_74 = arith.constant 1.000000e+00 : f32
    %322 = vector.broadcast %cst_74 : f32 to vector<8x32xf32>
    %323 = arith.subf %321, %322 : vector<8x32xf32>
    %324 = vector.extract_strided_slice %316 {offsets = [0, 96], sizes = [8, 32], strides = [1, 1]} : vector<8x128xf32> to vector<8x32xf32>
    %325 = arith.mulf %318, %285 : vector<8x32xf32>
    %326 = arith.mulf %317, %323 : vector<8x32xf32>
    %327 = arith.addf %325, %326 : vector<8x32xf32>
    %328 = math.tanh %327 : vector<8x32xf32>
    %329 = arith.mulf %324, %328 : vector<8x32xf32>
    %330 = tpu.concatenate %329, %308 in 1 : vector<8x32xf32>, vector<8x32xf32> -> vector<8x64xf32>
    %cst_75 = arith.constant dense<0.000000e+00> : vector<8x128xf32>
    %331 = tpu.matmul %330, %7, %cst_75 {dimension_numbers = #tpu.dot_dimension_numbers<[1], [0], [0], [1], [0, 0, 1, 1], [], []>} : vector<8x64xf32>, vector<64x128xf32>, vector<8x128xf32> -> vector<8x128xf32>
    %332 = arith.addf %331, %10 : vector<8x128xf32>
    %333 = arith.negf %332 : vector<8x128xf32>
    %334 = math.exp %333 : vector<8x128xf32>
    %cst_76 = arith.constant 1.000000e+00 : f32
    %335 = vector.broadcast %cst_76 : f32 to vector<8x128xf32>
    %336 = arith.addf %335, %334 : vector<8x128xf32>
    %337 = arith.divf %335, %336 : vector<8x128xf32>
    %338 = vector.extract_strided_slice %337 {offsets = [0, 0], sizes = [8, 32], strides = [1, 1]} : vector<8x128xf32> to vector<8x32xf32>
    %339 = vector.extract_strided_slice %337 {offsets = [0, 32], sizes = [8, 32], strides = [1, 1]} : vector<8x128xf32> to vector<8x32xf32>
    %340 = vector.extract_strided_slice %337 {offsets = [0, 64], sizes = [8, 32], strides = [1, 1]} : vector<8x128xf32> to vector<8x32xf32>
    %cst_77 = arith.constant 2.000000e+00 : f32
    %341 = vector.broadcast %cst_77 : f32 to vector<8x32xf32>
    %342 = arith.mulf %341, %340 : vector<8x32xf32>
    %cst_78 = arith.constant 1.000000e+00 : f32
    %343 = vector.broadcast %cst_78 : f32 to vector<8x32xf32>
    %344 = arith.subf %342, %343 : vector<8x32xf32>
    %345 = vector.extract_strided_slice %337 {offsets = [0, 96], sizes = [8, 32], strides = [1, 1]} : vector<8x128xf32> to vector<8x32xf32>
    %346 = arith.mulf %339, %306 : vector<8x32xf32>
    %347 = arith.mulf %338, %344 : vector<8x32xf32>
    %348 = arith.addf %346, %347 : vector<8x32xf32>
    %349 = math.tanh %348 : vector<8x32xf32>
    %350 = arith.mulf %345, %349 : vector<8x32xf32>
    %c0_79 = arith.constant 0 : index
    %c0_80 = arith.constant 0 : index
    %351 = vector.load %arg6[%c0_79, %c0_80] : memref<32x32xf32, #tpu.memory_space<vmem>>, vector<32x32xf32>
    %cst_81 = arith.constant dense<0.000000e+00> : vector<8x32xf32>
    %352 = tpu.matmul %350, %351, %cst_81 {dimension_numbers = #tpu.dot_dimension_numbers<[1], [0], [0], [1], [0, 0, 1, 1], [], []>} : vector<8x32xf32>, vector<32x32xf32>, vector<8x32xf32> -> vector<8x32xf32>
    %c0_82 = arith.constant 0 : index
    %c0_83 = arith.constant 0 : index
    %353 = vector.load %arg7[%c0_82, %c0_83] : memref<1x32xf32, #tpu.memory_space<vmem>>, vector<1x32xf32>
    %354 = vector.broadcast %353 : vector<1x32xf32> to vector<8x32xf32>
    %355 = arith.addf %352, %354 : vector<8x32xf32>
    %cst_84 = arith.constant 0.000000e+00 : f32
    %356 = vector.broadcast %cst_84 : f32 to vector<8x32xf32>
    %357 = arith.maximumf %355, %356 : vector<8x32xf32>
    %c0_85 = arith.constant 0 : index
    %c0_86 = arith.constant 0 : index
    %358 = vector.load %arg8[%c0_85, %c0_86] : memref<32x128xf32, #tpu.memory_space<vmem>>, vector<32x128xf32>
    %cst_87 = arith.constant dense<0.000000e+00> : vector<8x128xf32>
    %359 = tpu.matmul %357, %358, %cst_87 {dimension_numbers = #tpu.dot_dimension_numbers<[1], [0], [0], [1], [0, 0, 1, 1], [], []>} : vector<8x32xf32>, vector<32x128xf32>, vector<8x128xf32> -> vector<8x128xf32>
    %c0_88 = arith.constant 0 : index
    %c0_89 = arith.constant 0 : index
    %360 = vector.load %arg9[%c0_88, %c0_89] : memref<1x128xf32, #tpu.memory_space<vmem>>, vector<1x128xf32>
    %361 = vector.broadcast %360 : vector<1x128xf32> to vector<8x128xf32>
    %362 = arith.addf %359, %361 : vector<8x128xf32>
    %c0_90 = arith.constant 0 : index
    %c0_91 = arith.constant 0 : index
    %363 = vector.load %arg10[%c0_90, %c0_91] : memref<8x128xf32, #tpu.memory_space<vmem>>, vector<8x128xf32>
    tpu.vector_store %arg10[%c0_90, %c0_91], %362 {strides = array<i32>} : memref<8x128xf32, #tpu.memory_space<vmem>>, vector<8x128xf32>,
    return
  }
}

</mosaic_0001>

<llo_original>
// kernel: lstm_motion_predictor.1
$region0: #{lstm_motion_predictor.1}
  #allocation0 [shape = 'u32[]', space=smem, size = 0x4, offset = 0x4, fixed_abs, tag = 'smem constant byte address 0x4 - core index']
  #allocation1 [shape = 'u32[72,128]{1,0:T(1,128)}', space=vmem, size = 0x9000, scoped, tag = 'internal scratch']
  %s0 = inlined_call_operand.vmem [shape: f32[64,16], index: 0, kind: input, shape index: {}]
  %s1 = inlined_call_operand.vmem [shape: f32[16,128], index: 1, kind: input, shape index: {}]
  %s2 = inlined_call_operand.vmem [shape: f32[32,128], index: 2, kind: input, shape index: {}]
  %s3 = inlined_call_operand.vmem [shape: f32[1,128], index: 3, kind: input, shape index: {}]
  %s4 = inlined_call_operand.vmem [shape: f32[64,128], index: 4, kind: input, shape index: {}]
  %s5 = inlined_call_operand.vmem [shape: f32[1,128], index: 5, kind: input, shape index: {}]
  %s6 = inlined_call_operand.vmem [shape: f32[32,32], index: 6, kind: input, shape index: {}]
  %s7 = inlined_call_operand.vmem [shape: f32[1,32], index: 7, kind: input, shape index: {}]
  %s8 = inlined_call_operand.vmem [shape: f32[32,128], index: 8, kind: input, shape index: {}]
  %s9 = inlined_call_operand.vmem [shape: f32[1,128], index: 9, kind: input, shape index: {}]
  %s10 = inlined_call_operand.vmem [shape: f32[8,128], index: 10, kind: output, shape index: {}]
  %s11 = sld [smem:[#allocation0]]
  $region50: #{lstm_motion_predictor.1} parent=0
    _
  %s13 = ssub.s32 1, %s11
  %s14 = scalar_select 0, %s13, %s11
  // Predicated region
  $region2: #{lstm_motion_predictor.1} parent=0 // pred_check
    _
  $region3: #{lstm_motion_predictor.1} parent=0 // pred_check_branch
    %16 = sbr.rel (0) target = $region5
  $region4: #{lstm_motion_predictor.1} parent=0 // pred_region
    _
  $region5: #{lstm_motion_predictor.1} parent=0 // pred_fallthru
    _
  // Predicated region
  $region6: #{lstm_motion_predictor.1} parent=0 // pred_check
    _
  $region7: #{lstm_motion_predictor.1} parent=0 // pred_check_branch
    %18 = sbr.rel (0) target = $region9
  $region8: #{lstm_motion_predictor.1} parent=0 // pred_region
    _
  $region9: #{lstm_motion_predictor.1} parent=0 // pred_fallthru
    _
  // Predicated region
  $region10: #{lstm_motion_predictor.1} parent=0 // pred_check
    _
  $region11: #{lstm_motion_predictor.1} parent=0 // pred_check_branch
    %20 = sbr.rel (0) target = $region13
  $region12: #{lstm_motion_predictor.1} parent=0 // pred_region
    _
  $region13: #{lstm_motion_predictor.1} parent=0 // pred_fallthru
    _
  // Predicated region
  $region14: #{lstm_motion_predictor.1} parent=0 // pred_check
    _
  $region15: #{lstm_motion_predictor.1} parent=0 // pred_check_branch
    %22 = sbr.rel (0) target = $region17
  $region16: #{lstm_motion_predictor.1} parent=0 // pred_region
    _
  $region17: #{lstm_motion_predictor.1} parent=0 // pred_fallthru
    _
  // Predicated region
  $region18: #{lstm_motion_predictor.1} parent=0 // pred_check
    _
  $region19: #{lstm_motion_predictor.1} parent=0 // pred_check_branch
    %24 = sbr.rel (0) target = $region21
  $region20: #{lstm_motion_predictor.1} parent=0 // pred_region
    _
  $region21: #{lstm_motion_predictor.1} parent=0 // pred_fallthru
    _
  // Predicated region
  $region22: #{lstm_motion_predictor.1} parent=0 // pred_check
    _
  $region23: #{lstm_motion_predictor.1} parent=0 // pred_check_branch
    %26 = sbr.rel (0) target = $region25
  $region24: #{lstm_motion_predictor.1} parent=0 // pred_region
    _
  $region25: #{lstm_motion_predictor.1} parent=0 // pred_fallthru
    _
  // Predicated region
  $region26: #{lstm_motion_predictor.1} parent=0 // pred_check
    _
  $region27: #{lstm_motion_predictor.1} parent=0 // pred_check_branch
    %28 = sbr.rel (0) target = $region29
  $region28: #{lstm_motion_predictor.1} parent=0 // pred_region
    _
  $region29: #{lstm_motion_predictor.1} parent=0 // pred_fallthru
    _
  // Predicated region
  $region30: #{lstm_motion_predictor.1} parent=0 // pred_check
    _
  $region31: #{lstm_motion_predictor.1} parent=0 // pred_check_branch
    %30 = sbr.rel (0) target = $region33
  $region32: #{lstm_motion_predictor.1} parent=0 // pred_region
    _
  $region33: #{lstm_motion_predictor.1} parent=0 // pred_fallthru
    _
  // Predicated region
  $region34: #{lstm_motion_predictor.1} parent=0 // pred_check
    _
  $region35: #{lstm_motion_predictor.1} parent=0 // pred_check_branch
    %32 = sbr.rel (0) target = $region37
  $region36: #{lstm_motion_predictor.1} parent=0 // pred_region
    _
  $region37: #{lstm_motion_predictor.1} parent=0 // pred_fallthru
    _
  // Predicated region
  $region38: #{lstm_motion_predictor.1} parent=0 // pred_check
    _
  $region39: #{lstm_motion_predictor.1} parent=0 // pred_check_branch
    %34 = sbr.rel (0) target = $region41
  $region40: #{lstm_motion_predictor.1} parent=0 // pred_region
    _
  $region41: #{lstm_motion_predictor.1} parent=0 // pred_fallthru
    _
  %v35 = vld [vmem:[%s0] sm:$0xff]
  %v36 = vld [vmem:[%s0 + $0x8] sm:$0xff]
  %v37 = vld [vmem:[%s0 + $0x10] sm:$0xff]
  %v38 = vld [vmem:[%s0 + $0x18] sm:$0xff]
  %v39 = vld [vmem:[%s0 + $0x20] sm:$0xff]
  %v40 = vld [vmem:[%s0 + $0x28] sm:$0xff]
  %v41 = vld [vmem:[%s0 + $0x30] sm:$0xff]
  %v42 = vld [vmem:[%s0 + $0x38] sm:$0xff]
  %v43 = vld [vmem:[%s1] sm:$0xff]
  %v44 = vld [vmem:[%s1 + $0x8] sm:$0xff]
  %v45 = vld [vmem:[%s3] sm:$0x1]
  %v47 = vperm.slane %v45, 0
  %vm49 = vcmask 130048
  %v51 = vsel %vm49, %v35, 0
  %v54 = vsel %vm49, %v36, 0
  %v57 = vsel %vm49, %v37, 0
  %v60 = vsel %vm49, %v38, 0
  %v63 = vsel %vm49, %v39, 0
  %v66 = vsel %vm49, %v40, 0
  %v69 = vsel %vm49, %v41, 0
  %v72 = vsel %vm49, %v42, 0
  %74 = vmatpush.msra.mxu0 0.0
  %75 = vmatpush.msra.mxu0 0.0
  %76 = vmatpush.msra.mxu0 0.0
  %77 = vmatpush.msra.mxu0 0.0
  %78 = vmatpush.msra.mxu0 0.0
  %79 = vmatpush.msra.mxu0 0.0
  %80 = vmatpush.msra.mxu0 0.0
  %81 = vmatpush.msra.mxu0 0.0
  %82 = vmatpush.msra.mxu0 0.0
  %83 = vmatpush.msra.mxu0 0.0
  %84 = vmatpush.msra.mxu0 0.0
  %85 = vmatpush.msra.mxu0 0.0
  %86 = vmatpush.msra.mxu0 0.0
  %87 = vmatpush.msra.mxu0 0.0
  %88 = vmatpush.msra.mxu0 %v44
  %89 = vmatpush.msra.mxu0 %v43
  %90 = vmatmul.f32.gmra.mxu0 %v51
  %v91 = vpop.f32.mrf.mxu0
  %v92 = vadd.f32 %v47, %v91
  %93 = vmatmul.f32.gmra.mxu0 %v54
  %v94 = vpop.f32.mrf.mxu0
  %v95 = vadd.f32 %v47, %v94
  %96 = vmatmul.f32.gmra.mxu0 %v57
  %v97 = vpop.f32.mrf.mxu0
  %v98 = vadd.f32 %v47, %v97
  %99 = vmatmul.f32.gmra.mxu0 %v60
  %v100 = vpop.f32.mrf.mxu0
  %v101 = vadd.f32 %v47, %v100
  %102 = vmatmul.f32.gmra.mxu0 %v63
  %v103 = vpop.f32.mrf.mxu0
  %v104 = vadd.f32 %v47, %v103
  %105 = vmatmul.f32.gmra.mxu0 %v66
  %v106 = vpop.f32.mrf.mxu0
  %v107 = vadd.f32 %v47, %v106
  %108 = vmatmul.f32.gmra.mxu0 %v69
  %v109 = vpop.f32.mrf.mxu0
  %v110 = vadd.f32 %v47, %v109
  %111 = vmatmul.f32.gmra.mxu0 %v72
  %v112 = vpop.f32.mrf.mxu0
  %v113 = vadd.f32 %v47, %v112
  %114 = vdwg.mxu0
  %v115 = vld [vmem:[%s2] sm:$0xff]
  %v116 = vld [vmem:[%s2 + $0x8] sm:$0xff]
  %v117 = vld [vmem:[%s2 + $0x10] sm:$0xff]
  %v118 = vld [vmem:[%s2 + $0x18] sm:$0xff]
  %v119 = vld [vmem:[%s4] sm:$0xff]
  %v120 = vld [vmem:[%s4 + $0x8] sm:$0xff]
  %v121 = vld [vmem:[%s4 + $0x10] sm:$0xff]
  %v122 = vld [vmem:[%s4 + $0x18] sm:$0xff]
  %v123 = vld [vmem:[%s4 + $0x20] sm:$0xff]
  %v124 = vld [vmem:[%s4 + $0x28] sm:$0xff]
  %v125 = vld [vmem:[%s4 + $0x30] sm:$0xff]
  %v126 = vld [vmem:[%s4 + $0x38] sm:$0xff]
  %v127 = vld [vmem:[%s5] sm:$0x1]
  %v129 = vperm.slane %v127, 0
  %vm131 = vcmask 261120
  %v133 = vsel %vm131, 0.0, 0
  %135 = vmatpush.msra.mxu0 0.0
  %136 = vmatpush.msra.mxu0 0.0
  %137 = vmatpush.msra.mxu0 0.0
  %138 = vmatpush.msra.mxu0 0.0
  %139 = vmatpush.msra.mxu0 0.0
  %140 = vmatpush.msra.mxu0 0.0
  %141 = vmatpush.msra.mxu0 0.0
  %142 = vmatpush.msra.mxu0 0.0
  %143 = vmatpush.msra.mxu0 0.0
  %144 = vmatpush.msra.mxu0 0.0
  %145 = vmatpush.msra.mxu0 0.0
  %146 = vmatpush.msra.mxu0 0.0
  %147 = vmatpush.msra.mxu0 %v118
  %148 = vmatpush.msra.mxu0 %v117
  %149 = vmatpush.msra.mxu0 %v116
  %150 = vmatpush.msra.mxu0 %v115
  %151 = vmatmul.f32.gmra.mxu0 %v133
  %v152 = vpop.f32.mrf.mxu0
  %v153 = vadd.f32 0.0, %v152
  %154 = vdwg.mxu0
  %v155 = vadd.f32 %v92, %v153
  %v156 = vxor.u32 %v155, 2147483648
  %v157 = vmul.f32 %v156, 1.442695
  %v158 = vpow.pop %v157
  %v159 = vadd.f32 %v158, 1.0
  %v160 = vrcp.pop %v159
  %v161 = vmul.f32 %v159, %v160
  %v162 = vsub.f32 1.0, %v161
  %v163 = vmul.f32 %v160, %v162
  %v164 = vadd.f32 %v160, %v163
  %vm165 = vweird.f32 %v159
  %vm166 = vweird.f32 %v160
  %vm167 = vmor %vm165, %vm166
  %v168 = vsel %vm167, %v160, %v164
  %v169 = vand.u32 2147483647, %v159
  %vm170 = vcmp.eq.f32.partialorder %v169, 8.507059e+37
  %v171 = vand.u32 %v159, 2147483648
  %v172 = vor.u32 1.1754944e-38, %v171
  %v173 = vsel %vm170, %v172, %v168
  %v174 = vmul.f32 1.0, %v173
  %v175 = vmul.f32 %v174, 2.0
  %v176 = vsub.f32 %v175, 1.0
  %v177 = vmul.f32 %v174, 0.0
  %179 = vrot.lane.b32.xlu0 %v176, 64
  %v180 = vpop.permute.xlu0 %179
  %v182 = vmul.f32 %v174, %v180
  %184 = vrot.lane.b32.xlu0 %v182, 32
  %v185 = vpop.permute.xlu0 %184
  %v187 = vadd.f32 %v177, %v185
  %v188 = vtanh.pop %v187
  %190 = vrot.lane.b32.xlu0 %v188, 64
  %v191 = vpop.permute.xlu0 %190
  %v193 = vmul.f32 %v174, %v191
  %195 = vrot.lane.b32.xlu0 %v193, 32
  %v196 = vpop.permute.xlu0 %195
  %v198 = vsel %vm131, %v196, 0.0
  %vm199 = vcmask 523264
  %v201 = vsel %vm199, %v198, 0
  %203 = vmatpush.msra.mxu0 0.0
  %204 = vmatpush.msra.mxu0 0.0
  %205 = vmatpush.msra.mxu0 0.0
  %206 = vmatpush.msra.mxu0 0.0
  %207 = vmatpush.msra.mxu0 0.0
  %208 = vmatpush.msra.mxu0 0.0
  %209 = vmatpush.msra.mxu0 0.0
  %210 = vmatpush.msra.mxu0 0.0
  %211 = vmatpush.msra.mxu0 %v126
  %212 = vmatpush.msra.mxu0 %v125
  %213 = vmatpush.msra.mxu0 %v124
  %214 = vmatpush.msra.mxu0 %v123
  %215 = vmatpush.msra.mxu0 %v122
  %216 = vmatpush.msra.mxu0 %v121
  %217 = vmatpush.msra.mxu0 %v120
  %218 = vmatpush.msra.mxu0 %v119
  %219 = vmatmul.f32.gmra.mxu0 %v201
  %v220 = vpop.f32.mrf.mxu0
  %v221 = vadd.f32 %v129, %v220
  %222 = vdwg.mxu0
  %v223 = vxor.u32 %v221, 2147483648
  %v224 = vmul.f32 %v223, 1.442695
  %v225 = vpow.pop %v224
  %v226 = vadd.f32 %v225, 1.0
  %v227 = vrcp.pop %v226
  %v228 = vmul.f32 %v226, %v227
  %v229 = vsub.f32 1.0, %v228
  %v230 = vmul.f32 %v227, %v229
  %v231 = vadd.f32 %v227, %v230
  %vm232 = vweird.f32 %v226
  %vm233 = vweird.f32 %v227
  %vm234 = vmor %vm232, %vm233
  %v235 = vsel %vm234, %v227, %v231
  %v236 = vand.u32 2147483647, %v226
  %vm237 = vcmp.eq.f32.partialorder %v236, 8.507059e+37
  %v238 = vand.u32 %v226, 2147483648
  %v239 = vor.u32 1.1754944e-38, %v238
  %v240 = vsel %vm237, %v239, %v235
  %v241 = vmul.f32 1.0, %v240
  %v242 = vmul.f32 %v241, 2.0
  %v243 = vsub.f32 %v242, 1.0
  %v244 = vmul.f32 %v241, 0.0
  %246 = vrot.lane.b32.xlu0 %v243, 64
  %v247 = vpop.permute.xlu0 %246
  %v249 = vmul.f32 %v241, %v247
  %251 = vrot.lane.b32.xlu0 %v249, 32
  %v252 = vpop.permute.xlu0 %251
  %v254 = vadd.f32 %v244, %v252
  %v255 = vtanh.pop %v254
  %257 = vrot.lane.b32.xlu0 %v255, 64
  %v258 = vpop.permute.xlu0 %257
  %v260 = vmul.f32 %v241, %v258
  %v261 = vsel %vm131, %v196, 0
  %263 = vmatpush.msra.mxu0 0.0
  %264 = vmatpush.msra.mxu0 0.0
  %265 = vmatpush.msra.mxu0 0.0
  %266 = vmatpush.msra.mxu0 0.0
  %267 = vmatpush.msra.mxu0 0.0
  %268 = vmatpush.msra.mxu0 0.0
  %269 = vmatpush.msra.mxu0 0.0
  %270 = vmatpush.msra.mxu0 0.0
  %271 = vmatpush.msra.mxu0 0.0
  %272 = vmatpush.msra.mxu0 0.0
  %273 = vmatpush.msra.mxu0 0.0
  %274 = vmatpush.msra.mxu0 0.0
  %275 = vmatpush.msra.mxu0 %v118
  %276 = vmatpush.msra.mxu0 %v117
  %277 = vmatpush.msra.mxu0 %v116
  %278 = vmatpush.msra.mxu0 %v115
  %279 = vmatmul.f32.gmra.mxu0 %v261
  %v280 = vpop.f32.mrf.mxu0
  %v281 = vadd.f32 0.0, %v280
  %282 = vdwg.mxu0
  %v283 = vadd.f32 %v95, %v281
  %v284 = vxor.u32 %v283, 2147483648
  %v285 = vmul.f32 %v284, 1.442695
  %v286 = vpow.pop %v285
  %v287 = vadd.f32 %v286, 1.0
  %v288 = vrcp.pop %v287
  %v289 = vmul.f32 %v287, %v288
  %v290 = vsub.f32 1.0, %v289
  %v291 = vmul.f32 %v288, %v290
  %v292 = vadd.f32 %v288, %v291
  %vm293 = vweird.f32 %v287
  %vm294 = vweird.f32 %v288
  %vm295 = vmor %vm293, %vm294
  %v296 = vsel %vm295, %v288, %v292
  %v297 = vand.u32 2147483647, %v287
  %vm298 = vcmp.eq.f32.partialorder %v297, 8.507059e+37
  %v299 = vand.u32 %v287, 2147483648
  %v300 = vor.u32 1.1754944e-38, %v299
  %v301 = vsel %vm298, %v300, %v296
  %v302 = vmul.f32 1.0, %v301
  %v303 = vmul.f32 %v302, 2.0
  %v304 = vsub.f32 %v303, 1.0
  %v305 = vmul.f32 %v302, %v187
  %307 = vrot.lane.b32.xlu0 %v304, 64
  %v308 = vpop.permute.xlu0 %307
  %v310 = vmul.f32 %v302, %v308
  %312 = vrot.lane.b32.xlu0 %v310, 32
  %v313 = vpop.permute.xlu0 %312
  %v315 = vadd.f32 %v305, %v313
  %v316 = vtanh.pop %v315
  %318 = vrot.lane.b32.xlu0 %v316, 64
  %v319 = vpop.permute.xlu0 %318
  %v321 = vmul.f32 %v302, %v319
  %323 = vrot.lane.b32.xlu0 %v321, 32
  %v324 = vpop.permute.xlu0 %323
  %327 = vrot.lane.b32.xlu0 %v260, 64
  %v328 = vpop.permute.xlu0 %327
  %v330 = vsel %vm131, %v324, %v328
  %v332 = vsel %vm199, %v330, 0
  %334 = vmatpush.msra.mxu0 0.0
  %335 = vmatpush.msra.mxu0 0.0
  %336 = vmatpush.msra.mxu0 0.0
  %337 = vmatpush.msra.mxu0 0.0
  %338 = vmatpush.msra.mxu0 0.0
  %339 = vmatpush.msra.mxu0 0.0
  %340 = vmatpush.msra.mxu0 0.0
  %341 = vmatpush.msra.mxu0 0.0
  %342 = vmatpush.msra.mxu0 %v126
  %343 = vmatpush.msra.mxu0 %v125
  %344 = vmatpush.msra.mxu0 %v124
  %345 = vmatpush.msra.mxu0 %v123
  %346 = vmatpush.msra.mxu0 %v122
  %347 = vmatpush.msra.mxu0 %v121
  %348 = vmatpush.msra.mxu0 %v120
  %349 = vmatpush.msra.mxu0 %v119
  %350 = vmatmul.f32.gmra.mxu0 %v332
  %v351 = vpop.f32.mrf.mxu0
  %v352 = vadd.f32 %v129, %v351
  %353 = vdwg.mxu0
  %v354 = vxor.u32 %v352, 2147483648
  %v355 = vmul.f32 %v354, 1.442695
  %v356 = vpow.pop %v355
  %v357 = vadd.f32 %v356, 1.0
  %v358 = vrcp.pop %v357
  %v359 = vmul.f32 %v357, %v358
  %v360 = vsub.f32 1.0, %v359
  %v361 = vmul.f32 %v358, %v360
  %v362 = vadd.f32 %v358, %v361
  %vm363 = vweird.f32 %v357
  %vm364 = vweird.f32 %v358
  %vm365 = vmor %vm363, %vm364
  %v366 = vsel %vm365, %v358, %v362
  %v367 = vand.u32 2147483647, %v357
  %vm368 = vcmp.eq.f32.partialorder %v367, 8.507059e+37
  %v369 = vand.u32 %v357, 2147483648
  %v370 = vor.u32 1.1754944e-38, %v369
  %v371 = vsel %vm368, %v370, %v366
  %v372 = vmul.f32 1.0, %v371
  %v373 = vmul.f32 %v372, 2.0
  %v374 = vsub.f32 %v373, 1.0
  %v375 = vmul.f32 %v372, %v254
  %377 = vrot.lane.b32.xlu0 %v374, 64
  %v378 = vpop.permute.xlu0 %377
  %v380 = vmul.f32 %v372, %v378
  %382 = vrot.lane.b32.xlu0 %v380, 32
  %v383 = vpop.permute.xlu0 %382
  %v385 = vadd.f32 %v375, %v383
  %v386 = vtanh.pop %v385
  %388 = vrot.lane.b32.xlu0 %v386, 64
  %v389 = vpop.permute.xlu0 %388
  %v391 = vmul.f32 %v372, %v389
  %v392 = vsel %vm131, %v324, 0
  %394 = vmatpush.msra.mxu0 0.0
  %395 = vmatpush.msra.mxu0 0.0
  %396 = vmatpush.msra.mxu0 0.0
  %397 = vmatpush.msra.mxu0 0.0
  %398 = vmatpush.msra.mxu0 0.0
  %399 = vmatpush.msra.mxu0 0.0
  %400 = vmatpush.msra.mxu0 0.0
  %401 = vmatpush.msra.mxu0 0.0
  %402 = vmatpush.msra.mxu0 0.0
  %403 = vmatpush.msra.mxu0 0.0
  %404 = vmatpush.msra.mxu0 0.0
  %405 = vmatpush.msra.mxu0 0.0
  %406 = vmatpush.msra.mxu0 %v118
  %407 = vmatpush.msra.mxu0 %v117
  %408 = vmatpush.msra.mxu0 %v116
  %409 = vmatpush.msra.mxu0 %v115
  %410 = vmatmul.f32.gmra.mxu0 %v392
  %v411 = vpop.f32.mrf.mxu0
  %v412 = vadd.f32 0.0, %v411
  %413 = vdwg.mxu0
  %v414 = vadd.f32 %v98, %v412
  %v415 = vxor.u32 %v414, 2147483648
  %v416 = vmul.f32 %v415, 1.442695
  %v417 = vpow.pop %v416
  %v418 = vadd.f32 %v417, 1.0
  %v419 = vrcp.pop %v418
  %v420 = vmul.f32 %v418, %v419
  %v421 = vsub.f32 1.0, %v420
  %v422 = vmul.f32 %v419, %v421
  %v423 = vadd.f32 %v419, %v422
  %vm424 = vweird.f32 %v418
  %vm425 = vweird.f32 %v419
  %vm426 = vmor %vm424, %vm425
  %v427 = vsel %vm426, %v419, %v423
  %v428 = vand.u32 2147483647, %v418
  %vm429 = vcmp.eq.f32.partialorder %v428, 8.507059e+37
  %v430 = vand.u32 %v418, 2147483648
  %v431 = vor.u32 1.1754944e-38, %v430
  %v432 = vsel %vm429, %v431, %v427
  %v433 = vmul.f32 1.0, %v432
  %v434 = vmul.f32 %v433, 2.0
  %v435 = vsub.f32 %v434, 1.0
  %v436 = vmul.f32 %v433, %v315
  %438 = vrot.lane.b32.xlu0 %v435, 64
  %v439 = vpop.permute.xlu0 %438
  %v441 = vmul.f32 %v433, %v439
  %443 = vrot.lane.b32.xlu0 %v441, 32
  %v444 = vpop.permute.xlu0 %443
  %v446 = vadd.f32 %v436, %v444
  %v447 = vtanh.pop %v446
  %449 = vrot.lane.b32.xlu0 %v447, 64
  %v450 = vpop.permute.xlu0 %449
  %v452 = vmul.f32 %v433, %v450
  %454 = vrot.lane.b32.xlu0 %v452, 32
  %v455 = vpop.permute.xlu0 %454
  %458 = vrot.lane.b32.xlu0 %v391, 64
  %v459 = vpop.permute.xlu0 %458
  %v461 = vsel %vm131, %v455, %v459
  %v463 = vsel %vm199, %v461, 0
  %465 = vmatpush.msra.mxu0 0.0
  %466 = vmatpush.msra.mxu0 0.0
  %467 = vmatpush.msra.mxu0 0.0
  %468 = vmatpush.msra.mxu0 0.0
  %469 = vmatpush.msra.mxu0 0.0
  %470 = vmatpush.msra.mxu0 0.0
  %471 = vmatpush.msra.mxu0 0.0
  %472 = vmatpush.msra.mxu0 0.0
  %473 = vmatpush.msra.mxu0 %v126
  %474 = vmatpush.msra.mxu0 %v125
  %475 = vmatpush.msra.mxu0 %v124
  %476 = vmatpush.msra.mxu0 %v123
  %477 = vmatpush.msra.mxu0 %v122
  %478 = vmatpush.msra.mxu0 %v121
  %479 = vmatpush.msra.mxu0 %v120
  %480 = vmatpush.msra.mxu0 %v119
  %481 = vmatmul.f32.gmra.mxu0 %v463
  %v482 = vpop.f32.mrf.mxu0
  %v483 = vadd.f32 %v129, %v482
  %484 = vdwg.mxu0
  %v485 = vxor.u32 %v483, 2147483648
  %v486 = vmul.f32 %v485, 1.442695
  %v487 = vpow.pop %v486
  %v488 = vadd.f32 %v487, 1.0
  %v489 = vrcp.pop %v488
  %v490 = vmul.f32 %v488, %v489
  %v491 = vsub.f32 1.0, %v490
  %v492 = vmul.f32 %v489, %v491
  %v493 = vadd.f32 %v489, %v492
  %vm494 = vweird.f32 %v488
  %vm495 = vweird.f32 %v489
  %vm496 = vmor %vm494, %vm495
  %v497 = vsel %vm496, %v489, %v493
  %v498 = vand.u32 2147483647, %v488
  %vm499 = vcmp.eq.f32.partialorder %v498, 8.507059e+37
  %v500 = vand.u32 %v488, 2147483648
  %v501 = vor.u32 1.1754944e-38, %v500
  %v502 = vsel %vm499, %v501, %v497
  %v503 = vmul.f32 1.0, %v502
  %v504 = vmul.f32 %v503, 2.0
  %v505 = vsub.f32 %v504, 1.0
  %v506 = vmul.f32 %v503, %v385
  %508 = vrot.lane.b32.xlu0 %v505, 64
  %v509 = vpop.permute.xlu0 %508
  %v511 = vmul.f32 %v503, %v509
  %513 = vrot.lane.b32.xlu0 %v511, 32
  %v514 = vpop.permute.xlu0 %513
  %v516 = vadd.f32 %v506, %v514
  %v517 = vtanh.pop %v516
  %519 = vrot.lane.b32.xlu0 %v517, 64
  %v520 = vpop.permute.xlu0 %519
  %v522 = vmul.f32 %v503, %v520
  %v523 = vsel %vm131, %v455, 0
  %525 = vmatpush.msra.mxu0 0.0
  %526 = vmatpush.msra.mxu0 0.0
  %527 = vmatpush.msra.mxu0 0.0
  %528 = vmatpush.msra.mxu0 0.0
  %529 = vmatpush.msra.mxu0 0.0
  %530 = vmatpush.msra.mxu0 0.0
  %531 = vmatpush.msra.mxu0 0.0
  %532 = vmatpush.msra.mxu0 0.0
  %533 = vmatpush.msra.mxu0 0.0
  %534 = vmatpush.msra.mxu0 0.0
  %535 = vmatpush.msra.mxu0 0.0
  %536 = vmatpush.msra.mxu0 0.0
  %537 = vmatpush.msra.mxu0 %v118
  %538 = vmatpush.msra.mxu0 %v117
  %539 = vmatpush.msra.mxu0 %v116
  %540 = vmatpush.msra.mxu0 %v115
  %541 = vmatmul.f32.gmra.mxu0 %v523
  %v542 = vpop.f32.mrf.mxu0
  %v543 = vadd.f32 0.0, %v542
  %544 = vdwg.mxu0
  %v545 = vadd.f32 %v101, %v543
  %v546 = vxor.u32 %v545, 2147483648
  %v547 = vmul.f32 %v546, 1.442695
  %v548 = vpow.pop %v547
  %v549 = vadd.f32 %v548, 1.0
  %v550 = vrcp.pop %v549
  %v551 = vmul.f32 %v549, %v550
  %v552 = vsub.f32 1.0, %v551
  %v553 = vmul.f32 %v550, %v552
  %v554 = vadd.f32 %v550, %v553
  %vm555 = vweird.f32 %v549
  %vm556 = vweird.f32 %v550
  %vm557 = vmor %vm555, %vm556
  %v558 = vsel %vm557, %v550, %v554
  %v559 = vand.u32 2147483647, %v549
  %vm560 = vcmp.eq.f32.partialorder %v559, 8.507059e+37
  %v561 = vand.u32 %v549, 2147483648
  %v562 = vor.u32 1.1754944e-38, %v561
  %v563 = vsel %vm560, %v562, %v558
  %v564 = vmul.f32 1.0, %v563
  %v565 = vmul.f32 %v564, 2.0
  %v566 = vsub.f32 %v565, 1.0
  %v567 = vmul.f32 %v564, %v446
  %569 = vrot.lane.b32.xlu0 %v566, 64
  %v570 = vpop.permute.xlu0 %569
  %v572 = vmul.f32 %v564, %v570
  %574 = vrot.lane.b32.xlu0 %v572, 32
  %v575 = vpop.permute.xlu0 %574
  %v577 = vadd.f32 %v567, %v575
  %v578 = vtanh.pop %v577
  %580 = vrot.lane.b32.xlu0 %v578, 64
  %v581 = vpop.permute.xlu0 %580
  %v583 = vmul.f32 %v564, %v581
  %585 = vrot.lane.b32.xlu0 %v583, 32
  %v586 = vpop.permute.xlu0 %585
  %589 = vrot.lane.b32.xlu0 %v522, 64
  %v590 = vpop.permute.xlu0 %589
  %v592 = vsel %vm131, %v586, %v590
  %v594 = vsel %vm199, %v592, 0
  %596 = vmatpush.msra.mxu0 0.0
  %597 = vmatpush.msra.mxu0 0.0
  %598 = vmatpush.msra.mxu0 0.0
  %599 = vmatpush.msra.mxu0 0.0
  %600 = vmatpush.msra.mxu0 0.0
  %601 = vmatpush.msra.mxu0 0.0
  %602 = vmatpush.msra.mxu0 0.0
  %603 = vmatpush.msra.mxu0 0.0
  %604 = vmatpush.msra.mxu0 %v126
  %605 = vmatpush.msra.mxu0 %v125
  %606 = vmatpush.msra.mxu0 %v124
  %607 = vmatpush.msra.mxu0 %v123
  %608 = vmatpush.msra.mxu0 %v122
  %609 = vmatpush.msra.mxu0 %v121
  %610 = vmatpush.msra.mxu0 %v120
  %611 = vmatpush.msra.mxu0 %v119
  %612 = vmatmul.f32.gmra.mxu0 %v594
  %v613 = vpop.f32.mrf.mxu0
  %v614 = vadd.f32 %v129, %v613
  %615 = vdwg.mxu0
  %v616 = vxor.u32 %v614, 2147483648
  %v617 = vmul.f32 %v616, 1.442695
  %v618 = vpow.pop %v617
  %v619 = vadd.f32 %v618, 1.0
  %v620 = vrcp.pop %v619
  %v621 = vmul.f32 %v619, %v620
  %v622 = vsub.f32 1.0, %v621
  %v623 = vmul.f32 %v620, %v622
  %v624 = vadd.f32 %v620, %v623
  %vm625 = vweird.f32 %v619
  %vm626 = vweird.f32 %v620
  %vm627 = vmor %vm625, %vm626
  %v628 = vsel %vm627, %v620, %v624
  %v629 = vand.u32 2147483647, %v619
  %vm630 = vcmp.eq.f32.partialorder %v629, 8.507059e+37
  %v631 = vand.u32 %v619, 2147483648
  %v632 = vor.u32 1.1754944e-38, %v631
  %v633 = vsel %vm630, %v632, %v628
  %v634 = vmul.f32 1.0, %v633
  %v635 = vmul.f32 %v634, 2.0
  %v636 = vsub.f32 %v635, 1.0
  %v637 = vmul.f32 %v634, %v516
  %639 = vrot.lane.b32.xlu0 %v636, 64
  %v640 = vpop.permute.xlu0 %639
  %v642 = vmul.f32 %v634, %v640
  %644 = vrot.lane.b32.xlu0 %v642, 32
  %v645 = vpop.permute.xlu0 %644
  %v647 = vadd.f32 %v637, %v645
  %v648 = vtanh.pop %v647
  %650 = vrot.lane.b32.xlu0 %v648, 64
  %v651 = vpop.permute.xlu0 %650
  %v653 = vmul.f32 %v634, %v651
  %v654 = vsel %vm131, %v586, 0
  %656 = vmatpush.msra.mxu0 0.0
  %657 = vmatpush.msra.mxu0 0.0
  %658 = vmatpush.msra.mxu0 0.0
  %659 = vmatpush.msra.mxu0 0.0
  %660 = vmatpush.msra.mxu0 0.0
  %661 = vmatpush.msra.mxu0 0.0
  %662 = vmatpush.msra.mxu0 0.0
  %663 = vmatpush.msra.mxu0 0.0
  %664 = vmatpush.msra.mxu0 0.0
  %665 = vmatpush.msra.mxu0 0.0
  %666 = vmatpush.msra.mxu0 0.0
  %667 = vmatpush.msra.mxu0 0.0
  %668 = vmatpush.msra.mxu0 %v118
  %669 = vmatpush.msra.mxu0 %v117
  %670 = vmatpush.msra.mxu0 %v116
  %671 = vmatpush.msra.mxu0 %v115
  %672 = vmatmul.f32.gmra.mxu0 %v654
  %v673 = vpop.f32.mrf.mxu0
  %v674 = vadd.f32 0.0, %v673
  %675 = vdwg.mxu0
  %v676 = vadd.f32 %v104, %v674
  %v677 = vxor.u32 %v676, 2147483648
  %v678 = vmul.f32 %v677, 1.442695
  %v679 = vpow.pop %v678
  %v680 = vadd.f32 %v679, 1.0
  %v681 = vrcp.pop %v680
  %v682 = vmul.f32 %v680, %v681
  %v683 = vsub.f32 1.0, %v682
  %v684 = vmul.f32 %v681, %v683
  %v685 = vadd.f32 %v681, %v684
  %vm686 = vweird.f32 %v680
  %vm687 = vweird.f32 %v681
  %vm688 = vmor %vm686, %vm687
  %v689 = vsel %vm688, %v681, %v685
  %v690 = vand.u32 2147483647, %v680
  %vm691 = vcmp.eq.f32.partialorder %v690, 8.507059e+37
  %v692 = vand.u32 %v680, 2147483648
  %v693 = vor.u32 1.1754944e-38, %v692
  %v694 = vsel %vm691, %v693, %v689
  %v695 = vmul.f32 1.0, %v694
  %v696 = vmul.f32 %v695, 2.0
  %v697 = vsub.f32 %v696, 1.0
  %v698 = vmul.f32 %v695, %v577
  %700 = vrot.lane.b32.xlu0 %v697, 64
  %v701 = vpop.permute.xlu0 %700
  %v703 = vmul.f32 %v695, %v701
  %705 = vrot.lane.b32.xlu0 %v703, 32
  %v706 = vpop.permute.xlu0 %705
  %v708 = vadd.f32 %v698, %v706
  %v709 = vtanh.pop %v708
  %711 = vrot.lane.b32.xlu0 %v709, 64
  %v712 = vpop.permute.xlu0 %711
  %v714 = vmul.f32 %v695, %v712
  %716 = vrot.lane.b32.xlu0 %v714, 32
  %v717 = vpop.permute.xlu0 %716
  %720 = vrot.lane.b32.xlu0 %v653, 64
  %v721 = vpop.permute.xlu0 %720
  %v723 = vsel %vm131, %v717, %v721
  %v725 = vsel %vm199, %v723, 0
  %727 = vmatpush.msra.mxu0 0.0
  %728 = vmatpush.msra.mxu0 0.0
  %729 = vmatpush.msra.mxu0 0.0
  %730 = vmatpush.msra.mxu0 0.0
  %731 = vmatpush.msra.mxu0 0.0
  %732 = vmatpush.msra.mxu0 0.0
  %733 = vmatpush.msra.mxu0 0.0
  %734 = vmatpush.msra.mxu0 0.0
  %735 = vmatpush.msra.mxu0 %v126
  %736 = vmatpush.msra.mxu0 %v125
  %737 = vmatpush.msra.mxu0 %v124
  %738 = vmatpush.msra.mxu0 %v123
  %739 = vmatpush.msra.mxu0 %v122
  %740 = vmatpush.msra.mxu0 %v121
  %741 = vmatpush.msra.mxu0 %v120
  %742 = vmatpush.msra.mxu0 %v119
  %743 = vmatmul.f32.gmra.mxu0 %v725
  %v744 = vpop.f32.mrf.mxu0
  %v745 = vadd.f32 %v129, %v744
  %746 = vdwg.mxu0
  %v747 = vxor.u32 %v745, 2147483648
  %v748 = vmul.f32 %v747, 1.442695
  %v749 = vpow.pop %v748
  %v750 = vadd.f32 %v749, 1.0
  %v751 = vrcp.pop %v750
  %v752 = vmul.f32 %v750, %v751
  %v753 = vsub.f32 1.0, %v752
  %v754 = vmul.f32 %v751, %v753
  %v755 = vadd.f32 %v751, %v754
  %vm756 = vweird.f32 %v750
  %vm757 = vweird.f32 %v751
  %vm758 = vmor %vm756, %vm757
  %v759 = vsel %vm758, %v751, %v755
  %v760 = vand.u32 2147483647, %v750
  %vm761 = vcmp.eq.f32.partialorder %v760, 8.507059e+37
  %v762 = vand.u32 %v750, 2147483648
  %v763 = vor.u32 1.1754944e-38, %v762
  %v764 = vsel %vm761, %v763, %v759
  %v765 = vmul.f32 1.0, %v764
  %v766 = vmul.f32 %v765, 2.0
  %v767 = vsub.f32 %v766, 1.0
  %v768 = vmul.f32 %v765, %v647
  %770 = vrot.lane.b32.xlu0 %v767, 64
  %v771 = vpop.permute.xlu0 %770
  %v773 = vmul.f32 %v765, %v771
  %775 = vrot.lane.b32.xlu0 %v773, 32
  %v776 = vpop.permute.xlu0 %775
  %v778 = vadd.f32 %v768, %v776
  %v779 = vtanh.pop %v778
  %781 = vrot.lane.b32.xlu0 %v779, 64
  %v782 = vpop.permute.xlu0 %781
  %v784 = vmul.f32 %v765, %v782
  %v785 = vsel %vm131, %v717, 0
  %787 = vmatpush.msra.mxu0 0.0
  %788 = vmatpush.msra.mxu0 0.0
  %789 = vmatpush.msra.mxu0 0.0
  %790 = vmatpush.msra.mxu0 0.0
  %791 = vmatpush.msra.mxu0 0.0
  %792 = vmatpush.msra.mxu0 0.0
  %793 = vmatpush.msra.mxu0 0.0
  %794 = vmatpush.msra.mxu0 0.0
  %795 = vmatpush.msra.mxu0 0.0
  %796 = vmatpush.msra.mxu0 0.0
  %797 = vmatpush.msra.mxu0 0.0
  %798 = vmatpush.msra.mxu0 0.0
  %799 = vmatpush.msra.mxu0 %v118
  %800 = vmatpush.msra.mxu0 %v117
  %801 = vmatpush.msra.mxu0 %v116
  %802 = vmatpush.msra.mxu0 %v115
  %803 = vmatmul.f32.gmra.mxu0 %v785
  %v804 = vpop.f32.mrf.mxu0
  %v805 = vadd.f32 0.0, %v804
  %806 = vdwg.mxu0
  %v807 = vadd.f32 %v107, %v805
  %v808 = vxor.u32 %v807, 2147483648
  %v809 = vmul.f32 %v808, 1.442695
  %v810 = vpow.pop %v809
  %v811 = vadd.f32 %v810, 1.0
  %v812 = vrcp.pop %v811
  %v813 = vmul.f32 %v811, %v812
  %v814 = vsub.f32 1.0, %v813
  %v815 = vmul.f32 %v812, %v814
  %v816 = vadd.f32 %v812, %v815
  %vm817 = vweird.f32 %v811
  %vm818 = vweird.f32 %v812
  %vm819 = vmor %vm817, %vm818
  %v820 = vsel %vm819, %v812, %v816
  %v821 = vand.u32 2147483647, %v811
  %vm822 = vcmp.eq.f32.partialorder %v821, 8.507059e+37
  %v823 = vand.u32 %v811, 2147483648
  %v824 = vor.u32 1.1754944e-38, %v823
  %v825 = vsel %vm822, %v824, %v820
  %v826 = vmul.f32 1.0, %v825
  %v827 = vmul.f32 %v826, 2.0
  %v828 = vsub.f32 %v827, 1.0
  %v829 = vmul.f32 %v826, %v708
  %831 = vrot.lane.b32.xlu0 %v828, 64
  %v832 = vpop.permute.xlu0 %831
  %v834 = vmul.f32 %v826, %v832
  %836 = vrot.lane.b32.xlu0 %v834, 32
  %v837 = vpop.permute.xlu0 %836
  %v839 = vadd.f32 %v829, %v837
  %v840 = vtanh.pop %v839
  %842 = vrot.lane.b32.xlu0 %v840, 64
  %v843 = vpop.permute.xlu0 %842
  %v845 = vmul.f32 %v826, %v843
  %847 = vrot.lane.b32.xlu0 %v845, 32
  %v848 = vpop.permute.xlu0 %847
  %851 = vrot.lane.b32.xlu0 %v784, 64
  %v852 = vpop.permute.xlu0 %851
  %v854 = vsel %vm131, %v848, %v852
  %v856 = vsel %vm199, %v854, 0
  %858 = vmatpush.msra.mxu0 0.0
  %859 = vmatpush.msra.mxu0 0.0
  %860 = vmatpush.msra.mxu0 0.0
  %861 = vmatpush.msra.mxu0 0.0
  %862 = vmatpush.msra.mxu0 0.0
  %863 = vmatpush.msra.mxu0 0.0
  %864 = vmatpush.msra.mxu0 0.0
  %865 = vmatpush.msra.mxu0 0.0
  %866 = vmatpush.msra.mxu0 %v126
  %867 = vmatpush.msra.mxu0 %v125
  %868 = vmatpush.msra.mxu0 %v124
  %869 = vmatpush.msra.mxu0 %v123
  %870 = vmatpush.msra.mxu0 %v122
  %871 = vmatpush.msra.mxu0 %v121
  %872 = vmatpush.msra.mxu0 %v120
  %873 = vmatpush.msra.mxu0 %v119
  %874 = vmatmul.f32.gmra.mxu0 %v856
  %v875 = vpop.f32.mrf.mxu0
  %v876 = vadd.f32 %v129, %v875
  %877 = vdwg.mxu0
  %v878 = vxor.u32 %v876, 2147483648
  %v879 = vmul.f32 %v878, 1.442695
  %v880 = vpow.pop %v879
  %v881 = vadd.f32 %v880, 1.0
  %v882 = vrcp.pop %v881
  %v883 = vmul.f32 %v881, %v882
  %v884 = vsub.f32 1.0, %v883
  %v885 = vmul.f32 %v882, %v884
  %v886 = vadd.f32 %v882, %v885
  %vm887 = vweird.f32 %v881
  %vm888 = vweird.f32 %v882
  %vm889 = vmor %vm887, %vm888
  %v890 = vsel %vm889, %v882, %v886
  %v891 = vand.u32 2147483647, %v881
  %vm892 = vcmp.eq.f32.partialorder %v891, 8.507059e+37
  %v893 = vand.u32 %v881, 2147483648
  %v894 = vor.u32 1.1754944e-38, %v893
  %v895 = vsel %vm892, %v894, %v890
  %v896 = vmul.f32 1.0, %v895
  %v897 = vmul.f32 %v896, 2.0
  %v898 = vsub.f32 %v897, 1.0
  %v899 = vmul.f32 %v896, %v778
  %901 = vrot.lane.b32.xlu0 %v898, 64
  %v902 = vpop.permute.xlu0 %901
  %v904 = vmul.f32 %v896, %v902
  %906 = vrot.lane.b32.xlu0 %v904, 32
  %v907 = vpop.permute.xlu0 %906
  %v909 = vadd.f32 %v899, %v907
  %v910 = vtanh.pop %v909
  %912 = vrot.lane.b32.xlu0 %v910, 64
  %v913 = vpop.permute.xlu0 %912
  %v915 = vmul.f32 %v896, %v913
  %v916 = vsel %vm131, %v848, 0
  %918 = vmatpush.msra.mxu0 0.0
  %919 = vmatpush.msra.mxu0 0.0
  %920 = vmatpush.msra.mxu0 0.0
  %921 = vmatpush.msra.mxu0 0.0
  %922 = vmatpush.msra.mxu0 0.0
  %923 = vmatpush.msra.mxu0 0.0
  %924 = vmatpush.msra.mxu0 0.0
  %925 = vmatpush.msra.mxu0 0.0
  %926 = vmatpush.msra.mxu0 0.0
  %927 = vmatpush.msra.mxu0 0.0
  %928 = vmatpush.msra.mxu0 0.0
  %929 = vmatpush.msra.mxu0 0.0
  %930 = vmatpush.msra.mxu0 %v118
  %931 = vmatpush.msra.mxu0 %v117
  %932 = vmatpush.msra.mxu0 %v116
  %933 = vmatpush.msra.mxu0 %v115
  %934 = vmatmul.f32.gmra.mxu0 %v916
  %v935 = vpop.f32.mrf.mxu0
  %v936 = vadd.f32 0.0, %v935
  %937 = vdwg.mxu0
  %v938 = vadd.f32 %v110, %v936
  %v939 = vxor.u32 %v938, 2147483648
  %v940 = vmul.f32 %v939, 1.442695
  %v941 = vpow.pop %v940
  %v942 = vadd.f32 %v941, 1.0
  %v943 = vrcp.pop %v942
  %v944 = vmul.f32 %v942, %v943
  %v945 = vsub.f32 1.0, %v944
  %v946 = vmul.f32 %v943, %v945
  %v947 = vadd.f32 %v943, %v946
  %vm948 = vweird.f32 %v942
  %vm949 = vweird.f32 %v943
  %vm950 = vmor %vm948, %vm949
  %v951 = vsel %vm950, %v943, %v947
  %v952 = vand.u32 2147483647, %v942
  %vm953 = vcmp.eq.f32.partialorder %v952, 8.507059e+37
  %v954 = vand.u32 %v942, 2147483648
  %v955 = vor.u32 1.1754944e-38, %v954
  %v956 = vsel %vm953, %v955, %v951
  %v957 = vmul.f32 1.0, %v956
  %v958 = vmul.f32 %v957, 2.0
  %v959 = vsub.f32 %v958, 1.0
  %v960 = vmul.f32 %v957, %v839
  %962 = vrot.lane.b32.xlu0 %v959, 64
  %v963 = vpop.permute.xlu0 %962
  %v965 = vmul.f32 %v957, %v963
  %967 = vrot.lane.b32.xlu0 %v965, 32
  %v968 = vpop.permute.xlu0 %967
  %v970 = vadd.f32 %v960, %v968
  %v971 = vtanh.pop %v970
  %973 = vrot.lane.b32.xlu0 %v971, 64
  %v974 = vpop.permute.xlu0 %973
  %v976 = vmul.f32 %v957, %v974
  %978 = vrot.lane.b32.xlu0 %v976, 32
  %v979 = vpop.permute.xlu0 %978
  %982 = vrot.lane.b32.xlu0 %v915, 64
  %v983 = vpop.permute.xlu0 %982
  %v985 = vsel %vm131, %v979, %v983
  %v987 = vsel %vm199, %v985, 0
  %989 = vmatpush.msra.mxu0 0.0
  %990 = vmatpush.msra.mxu0 0.0
  %991 = vmatpush.msra.mxu0 0.0
  %992 = vmatpush.msra.mxu0 0.0
  %993 = vmatpush.msra.mxu0 0.0
  %994 = vmatpush.msra.mxu0 0.0
  %995 = vmatpush.msra.mxu0 0.0
  %996 = vmatpush.msra.mxu0 0.0
  %997 = vmatpush.msra.mxu0 %v126
  %998 = vmatpush.msra.mxu0 %v125
  %999 = vmatpush.msra.mxu0 %v124
  %1000 = vmatpush.msra.mxu0 %v123
  %1001 = vmatpush.msra.mxu0 %v122
  %1002 = vmatpush.msra.mxu0 %v121
  %1003 = vmatpush.msra.mxu0 %v120
  %1004 = vmatpush.msra.mxu0 %v119
  %1005 = vmatmul.f32.gmra.mxu0 %v987
  %v1006 = vpop.f32.mrf.mxu0
  %v1007 = vadd.f32 %v129, %v1006
  %1008 = vdwg.mxu0
  %v1009 = vxor.u32 %v1007, 2147483648
  %v1010 = vmul.f32 %v1009, 1.442695
  %v1011 = vpow.pop %v1010
  %v1012 = vadd.f32 %v1011, 1.0
  %v1013 = vrcp.pop %v1012
  %v1014 = vmul.f32 %v1012, %v1013
  %v1015 = vsub.f32 1.0, %v1014
  %v1016 = vmul.f32 %v1013, %v1015
  %v1017 = vadd.f32 %v1013, %v1016
  %vm1018 = vweird.f32 %v1012
  %vm1019 = vweird.f32 %v1013
  %vm1020 = vmor %vm1018, %vm1019
  %v1021 = vsel %vm1020, %v1013, %v1017
  %v1022 = vand.u32 2147483647, %v1012
  %vm1023 = vcmp.eq.f32.partialorder %v1022, 8.507059e+37
  %v1024 = vand.u32 %v1012, 2147483648
  %v1025 = vor.u32 1.1754944e-38, %v1024
  %v1026 = vsel %vm1023, %v1025, %v1021
  %v1027 = vmul.f32 1.0, %v1026
  %v1028 = vmul.f32 %v1027, 2.0
  %v1029 = vsub.f32 %v1028, 1.0
  %v1030 = vmul.f32 %v1027, %v909
  %1032 = vrot.lane.b32.xlu0 %v1029, 64
  %v1033 = vpop.permute.xlu0 %1032
  %v1035 = vmul.f32 %v1027, %v1033
  %1037 = vrot.lane.b32.xlu0 %v1035, 32
  %v1038 = vpop.permute.xlu0 %1037
  %v1040 = vadd.f32 %v1030, %v1038
  %v1041 = vtanh.pop %v1040
  %1043 = vrot.lane.b32.xlu0 %v1041, 64
  %v1044 = vpop.permute.xlu0 %1043
  %v1046 = vmul.f32 %v1027, %v1044
  %v1047 = vsel %vm131, %v979, 0
  %1049 = vmatpush.msra.mxu0 0.0
  %1050 = vmatpush.msra.mxu0 0.0
  %1051 = vmatpush.msra.mxu0 0.0
  %1052 = vmatpush.msra.mxu0 0.0
  %1053 = vmatpush.msra.mxu0 0.0
  %1054 = vmatpush.msra.mxu0 0.0
  %1055 = vmatpush.msra.mxu0 0.0
  %1056 = vmatpush.msra.mxu0 0.0
  %1057 = vmatpush.msra.mxu0 0.0
  %1058 = vmatpush.msra.mxu0 0.0
  %1059 = vmatpush.msra.mxu0 0.0
  %1060 = vmatpush.msra.mxu0 0.0
  %1061 = vmatpush.msra.mxu0 %v118
  %1062 = vmatpush.msra.mxu0 %v117
  %1063 = vmatpush.msra.mxu0 %v116
  %1064 = vmatpush.msra.mxu0 %v115
  %1065 = vmatmul.f32.gmra.mxu0 %v1047
  %v1066 = vpop.f32.mrf.mxu0
  %v1067 = vadd.f32 0.0, %v1066
  %1068 = vdwg.mxu0
  %v1069 = vadd.f32 %v113, %v1067
  %v1070 = vxor.u32 %v1069, 2147483648
  %v1071 = vmul.f32 %v1070, 1.442695
  %v1072 = vpow.pop %v1071
  %v1073 = vadd.f32 %v1072, 1.0
  %v1074 = vrcp.pop %v1073
  %v1075 = vmul.f32 %v1073, %v1074
  %v1076 = vsub.f32 1.0, %v1075
  %v1077 = vmul.f32 %v1074, %v1076
  %v1078 = vadd.f32 %v1074, %v1077
  %vm1079 = vweird.f32 %v1073
  %vm1080 = vweird.f32 %v1074
  %vm1081 = vmor %vm1079, %vm1080
  %v1082 = vsel %vm1081, %v1074, %v1078
  %v1083 = vand.u32 2147483647, %v1073
  %vm1084 = vcmp.eq.f32.partialorder %v1083, 8.507059e+37
  %v1085 = vand.u32 %v1073, 2147483648
  %v1086 = vor.u32 1.1754944e-38, %v1085
  %v1087 = vsel %vm1084, %v1086, %v1082
  %v1088 = vmul.f32 1.0, %v1087
  %v1089 = vmul.f32 %v1088, 2.0
  %v1090 = vsub.f32 %v1089, 1.0
  %v1091 = vmul.f32 %v1088, %v970
  %1093 = vrot.lane.b32.xlu0 %v1090, 64
  %v1094 = vpop.permute.xlu0 %1093
  %v1096 = vmul.f32 %v1088, %v1094
  %1098 = vrot.lane.b32.xlu0 %v1096, 32
  %v1099 = vpop.permute.xlu0 %1098
  %v1101 = vadd.f32 %v1091, %v1099
  %v1102 = vtanh.pop %v1101
  %1104 = vrot.lane.b32.xlu0 %v1102, 64
  %v1105 = vpop.permute.xlu0 %1104
  %v1107 = vmul.f32 %v1088, %v1105
  %1109 = vrot.lane.b32.xlu0 %v1107, 32
  %v1110 = vpop.permute.xlu0 %1109
  %1113 = vrot.lane.b32.xlu0 %v1046, 64
  %v1114 = vpop.permute.xlu0 %1113
  %v1116 = vsel %vm131, %v1110, %v1114
  %v1118 = vsel %vm199, %v1116, 0
  %1120 = vmatpush.msra.mxu0 0.0
  %1121 = vmatpush.msra.mxu0 0.0
  %1122 = vmatpush.msra.mxu0 0.0
  %1123 = vmatpush.msra.mxu0 0.0
  %1124 = vmatpush.msra.mxu0 0.0
  %1125 = vmatpush.msra.mxu0 0.0
  %1126 = vmatpush.msra.mxu0 0.0
  %1127 = vmatpush.msra.mxu0 0.0
  %1128 = vmatpush.msra.mxu0 %v126
  %1129 = vmatpush.msra.mxu0 %v125
  %1130 = vmatpush.msra.mxu0 %v124
  %1131 = vmatpush.msra.mxu0 %v123
  %1132 = vmatpush.msra.mxu0 %v122
  %1133 = vmatpush.msra.mxu0 %v121
  %1134 = vmatpush.msra.mxu0 %v120
  %1135 = vmatpush.msra.mxu0 %v119
  %1136 = vmatmul.f32.gmra.mxu0 %v1118
  %v1137 = vpop.f32.mrf.mxu0
  %v1138 = vadd.f32 %v129, %v1137
  %1139 = vdwg.mxu0
  %v1140 = vxor.u32 %v1138, 2147483648
  %v1141 = vmul.f32 %v1140, 1.442695
  %v1142 = vpow.pop %v1141
  %v1143 = vadd.f32 %v1142, 1.0
  %v1144 = vrcp.pop %v1143
  %v1145 = vmul.f32 %v1143, %v1144
  %v1146 = vsub.f32 1.0, %v1145
  %v1147 = vmul.f32 %v1144, %v1146
  %v1148 = vadd.f32 %v1144, %v1147
  %vm1149 = vweird.f32 %v1143
  %vm1150 = vweird.f32 %v1144
  %vm1151 = vmor %vm1149, %vm1150
  %v1152 = vsel %vm1151, %v1144, %v1148
  %v1153 = vand.u32 2147483647, %v1143
  %vm1154 = vcmp.eq.f32.partialorder %v1153, 8.507059e+37
  %v1155 = vand.u32 %v1143, 2147483648
  %v1156 = vor.u32 1.1754944e-38, %v1155
  %v1157 = vsel %vm1154, %v1156, %v1152
  %v1158 = vmul.f32 1.0, %v1157
  %v1159 = vmul.f32 %v1158, 2.0
  %v1160 = vsub.f32 %v1159, 1.0
  %v1161 = vmul.f32 %v1158, %v1040
  %1163 = vrot.lane.b32.xlu0 %v1160, 64
  %v1164 = vpop.permute.xlu0 %1163
  %v1166 = vmul.f32 %v1158, %v1164
  %1168 = vrot.lane.b32.xlu0 %v1166, 32
  %v1169 = vpop.permute.xlu0 %1168
  %v1171 = vadd.f32 %v1161, %v1169
  %v1172 = vtanh.pop %v1171
  %1174 = vrot.lane.b32.xlu0 %v1172, 64
  %v1175 = vpop.permute.xlu0 %1174
  %v1177 = vmul.f32 %v1158, %v1175
  %v1178 = vld [vmem:[%s6] sm:$0xff]
  %v1179 = vld [vmem:[%s6 + $0x8] sm:$0xff]
  %v1180 = vld [vmem:[%s6 + $0x10] sm:$0xff]
  %v1181 = vld [vmem:[%s6 + $0x18] sm:$0xff]
  %v1182 = vld [vmem:[%s7] sm:$0x1]
  %v1184 = vperm.slane %v1182, 0
  %1187 = vrot.lane.b32.xlu0 %v1177, 32
  %v1188 = vpop.permute.xlu0 %1187
  %v1189 = vsel %vm131, %v1188, 0
  %1191 = vmatpush.msra.mxu0 0.0
  %1192 = vmatpush.msra.mxu0 0.0
  %1193 = vmatpush.msra.mxu0 0.0
  %1194 = vmatpush.msra.mxu0 0.0
  %1195 = vmatpush.msra.mxu0 0.0
  %1196 = vmatpush.msra.mxu0 0.0
  %1197 = vmatpush.msra.mxu0 0.0
  %1198 = vmatpush.msra.mxu0 0.0
  %1199 = vmatpush.msra.mxu0 0.0
  %1200 = vmatpush.msra.mxu0 0.0
  %1201 = vmatpush.msra.mxu0 0.0
  %1202 = vmatpush.msra.mxu0 0.0
  %1203 = vmatpush.msra.mxu0 %v1181
  %1204 = vmatpush.msra.mxu0 %v1180
  %1205 = vmatpush.msra.mxu0 %v1179
  %1206 = vmatpush.msra.mxu0 %v1178
  %1207 = vmatmul.f32.gmra.mxu0 %v1189
  %v1208 = vpop.f32.mrf.mxu0
  %v1209 = vadd.f32 %v1184, %v1208
  %1210 = vdwg.mxu0
  %v1211 = vmax.f32 %v1209, 0.0
  %v1212 = vld [vmem:[%s8] sm:$0xff]
  %v1213 = vld [vmem:[%s8 + $0x8] sm:$0xff]
  %v1214 = vld [vmem:[%s8 + $0x10] sm:$0xff]
  %v1215 = vld [vmem:[%s8 + $0x18] sm:$0xff]
  %v1216 = vld [vmem:[%s9] sm:$0x1]
  %v1218 = vperm.slane %v1216, 0
  %v1221 = vsel %vm131, %v1211, 0
  %1223 = vmatpush.msra.mxu0 0.0
  %1224 = vmatpush.msra.mxu0 0.0
  %1225 = vmatpush.msra.mxu0 0.0
  %1226 = vmatpush.msra.mxu0 0.0
  %1227 = vmatpush.msra.mxu0 0.0
  %1228 = vmatpush.msra.mxu0 0.0
  %1229 = vmatpush.msra.mxu0 0.0
  %1230 = vmatpush.msra.mxu0 0.0
  %1231 = vmatpush.msra.mxu0 0.0
  %1232 = vmatpush.msra.mxu0 0.0
  %1233 = vmatpush.msra.mxu0 0.0
  %1234 = vmatpush.msra.mxu0 0.0
  %1235 = vmatpush.msra.mxu0 %v1215
  %1236 = vmatpush.msra.mxu0 %v1214
  %1237 = vmatpush.msra.mxu0 %v1213
  %1238 = vmatpush.msra.mxu0 %v1212
  %1239 = vmatmul.f32.gmra.mxu0 %v1221
  %v1240 = vpop.f32.mrf.mxu0
  %v1241 = vadd.f32 %v1218, %v1240
  %1242 = vdwg.mxu0
  %1243 = vst [vmem:[%s10] sm:$0xff] %v1241
  // Predicated region
  $region42: #{lstm_motion_predictor.1} parent=0 // pred_check
    _
  $region43: #{lstm_motion_predictor.1} parent=0 // pred_check_branch
    %1245 = sbr.rel (0) target = $region45
  $region44: #{lstm_motion_predictor.1} parent=0 // pred_region
    _
  $region45: #{lstm_motion_predictor.1} parent=0 // pred_fallthru
    _
  // Predicated region
  $region46: #{lstm_motion_predictor.1} parent=0 // pred_check
    _
  $region47: #{lstm_motion_predictor.1} parent=0 // pred_check_branch
    %1247 = sbr.rel (0) target = $region49
  $region48: #{lstm_motion_predictor.1} parent=0 // pred_region
    _
  $region49: #{lstm_motion_predictor.1} parent=0 // pred_fallthru
    _

</llo_original>
